<compile_context>
chip_gen: v7x
topology: tpu7x:2x2x1
jax: 0.10.0
libtpu: 0.0.40
codegen_flags: <defaults>
</compile_context>

<pallas_src>
import functools

import jax
import jax.numpy as jnp
from jax.experimental import pallas as pl
from jax.experimental.pallas import tpu as pltpu


# ----------------------------- Pallas kernel --------------------------------

def _channel_attn_fused_kernel(t_ref, x_ref, wqkv_ref, bqkv_ref, wfus_ref, bfus_ref,
                               o_ref, *, num_chans, expan, d):
    """One program = one batch item.

    Refs:
      t_ref    : (NH,)      f32 SMEM   per-head scalar t
      x_ref    : (C, N)     f32 VMEM   input slab (N = H*W on lanes)
      wqkv_ref : (C, 3E)    f32 VMEM   grouped-QKV conv weight (cols: q[0:E], k[E:2E], v[2E:3E])
      bqkv_ref : (C, 3E)    f32 VMEM   grouped-QKV conv bias
      wfus_ref : (C, E)     f32 VMEM   grouped fusion weight
      bfus_ref : (C, 1)     f32 VMEM   grouped fusion bias
      o_ref    : (C, N)     f32 VMEM   fused output slab
    """
    eps2 = jnp.float32(1e-24)  # eps^2 of F.normalize's eps=1e-12 (||.|| clamp moved under rsqrt)

    # Static, fully unrolled loops over channel groups and expansions (heads).
    for g in range(num_chans):
        r0 = g * d
        xs = x_ref[r0:r0 + d, :]                      # (d, N) slab shared by this group's heads
        acc = None
        for e in range(expan):
            h = e * num_chans + g                     # head index, matches the torch .view order

            wq = wqkv_ref[r0:r0 + d, e:e + 1]
            bq = bqkv_ref[r0:r0 + d, e:e + 1]
            wk = wqkv_ref[r0:r0 + d, expan + e:expan + e + 1]
            bk = bqkv_ref[r0:r0 + d, expan + e:expan + e + 1]
            wv = wqkv_ref[r0:r0 + d, 2 * expan + e:2 * expan + e + 1]
            bv = bqkv_ref[r0:r0 + d, 2 * expan + e:2 * expan + e + 1]

            # grouped 1x1 conv == per-row scale + bias
            q = xs * wq + bq                          # (d, N)
            k = xs * wk + bk
            v = xs * wv + bv

            # F.normalize(dim=-1): L2 over the spatial axis N (EUP rsqrt, VALU-free-ish)
            q_n = q * jax.lax.rsqrt(
                jnp.maximum(jnp.sum(q * q, axis=-1, keepdims=True), eps2))
            k_n = k * jax.lax.rsqrt(
                jnp.maximum(jnp.sum(k * k, axis=-1, keepdims=True), eps2))

            # attn[i, j] = sum_n q_n[i, n] * k_n[j, n]   -> (d, d)
            attn = jax.lax.dot_general(
                q_n, k_n, (((1,), (1,)), ((), ())),
                preferred_element_type=jnp.float32)
            attn = attn * t_ref[h]                     # scale the tiny d x d matrix

            # softmax over keys (last axis)
            attn = attn - jnp.max(attn, axis=-1, keepdims=True)
            p = jnp.exp(attn)
            p = p * pl.reciprocal(jnp.sum(p, axis=-1, keepdims=True))

            # out[i, n] = sum_j p[i, j] * v[j, n]        -> (d, N)
            out_e = jax.lax.dot_general(
                p, v, (((1,), (0,)), ((), ())),
                preferred_element_type=jnp.float32)

            # grouped fusion conv: mix the E expansions of this channel group
            contrib = out_e * wfus_ref[r0:r0 + d, e:e + 1]
            acc = contrib if acc is None else acc + contrib

        o_ref[r0:r0 + d, :] = acc + bfus_ref[r0:r0 + d, :]


def channel_attention_core(x, w_qkv, b_qkv, w_fus, b_fus, t, *, num_chans, expan):
    """x: (B, C, N) f32; w/b_qkv: (C, 3E); w_fus: (C, E); b_fus: (C, 1); t: (NH,)."""
    B, C, N = x.shape
    d = C // num_chans

    kernel = functools.partial(_channel_attn_fused_kernel,
                               num_chans=num_chans, expan=expan, d=d)

    slab = pl.BlockSpec((pl.Squeezed(), C, N), lambda b: (b, 0, 0))

    # VMEM budget: double-buffered x + out slabs (f32) + small weights + slack.
    vmem_bytes = 2 * 2 * C * N * 4 + (2 << 20)
    vmem_bytes = int(min(max(vmem_bytes, 8 << 20), 32 << 20))

    return pl.pallas_call(
        kernel,
        out_shape=jax.ShapeDtypeStruct((B, C, N), jnp.float32),
        grid=(B,),
        in_specs=[
            pl.BlockSpec(memory_space=pltpu.MemorySpace.SMEM),        # t  (per-head scalars)
            slab,                                                     # x
            pl.BlockSpec((C, 3 * expan), lambda b: (0, 0)),           # w_qkv
            pl.BlockSpec((C, 3 * expan), lambda b: (0, 0)),           # b_qkv
            pl.BlockSpec((C, expan), lambda b: (0, 0)),               # w_fus
            pl.BlockSpec((C, 1), lambda b: (0, 0)),                   # b_fus
        ],
        out_specs=slab,
        compiler_params=pltpu.CompilerParams(
            dimension_semantics=("parallel",),
            vmem_limit_bytes=vmem_bytes),
    )(t, x, w_qkv, b_qkv, w_fus, b_fus)


# ----------------------------- JAX glue (module) ----------------------------

def init_params(key, embed_dim, num_chans, expan_att_chans):
    C, E = embed_dim, expan_att_chans
    num_heads = num_chans * E
    k1, k2, k3, k4 = jax.random.split(key, 4)
    return {
        # nn.Parameter(torch.ones(1, num_heads, 1, 1)) -> per-head scalar, init 1
        "t": jnp.ones((num_heads,), jnp.float32),
        # group_qkv: Conv2d(C, C*3E, 1, groups=C) -> weight (C*3E, 1, 1, 1), bias (C*3E,)
        "w_qkv": 0.5 * jax.random.normal(k1, (C * 3 * E,), jnp.float32),
        "b_qkv": 0.1 * jax.random.normal(k2, (C * 3 * E,), jnp.float32),
        # group_fus: Conv2d(C*E, C, 1, groups=C) -> weight (C, E, 1, 1), bias (C,)
        "w_fus": 0.5 * jax.random.normal(k3, (C, E), jnp.float32),
        "b_fus": 0.1 * jax.random.normal(k4, (C,), jnp.float32),
    }


def channel_attention_forward(x, params, num_chans, expan_att_chans):
    """Pallas-fused forward. x: (B, C, H, W) -> (B, C, H, W)."""
    B, C, H, W = x.shape
    E = expan_att_chans
    N = H * W
    assert C % num_chans == 0

    x2 = x.reshape(B, C, N).astype(jnp.float32)
    w_qkv = params["w_qkv"].reshape(C, 3 * E).astype(jnp.float32)
    b_qkv = params["b_qkv"].reshape(C, 3 * E).astype(jnp.float32)
    w_fus = params["w_fus"].astype(jnp.float32)
    b_fus = params["b_fus"].reshape(C, 1).astype(jnp.float32)
    t = params["t"].astype(jnp.float32)

    y = channel_attention_core(x2, w_qkv, b_qkv, w_fus, b_fus, t,
                               num_chans=num_chans, expan=E)
    return y.reshape(B, C, H, W)


# ----------------------------- pure-JAX reference ---------------------------

def channel_attention_ref(x, params, num_chans, expan_att_chans):
    """Straight transcription of the PyTorch ChannelAttention.forward."""
    B, C, H, W = x.shape
    E = expan_att_chans
    NH = num_chans * E
    N = H * W
    d = C // num_chans
    hi = jax.lax.Precision.HIGHEST

    w_qkv = params["w_qkv"].reshape(C, 3 * E)
    b_qkv = params["b_qkv"].reshape(C, 3 * E)
    qkv = (x[:, :, None, :, :] * w_qkv[None, :, :, None, None]
           + b_qkv[None, :, :, None, None])                 # (B, C, 3E, H, W)
    qkv = jnp.transpose(qkv, (0, 2, 1, 3, 4))                # (B, 3E, C, H, W)
    q, k, v = jnp.split(qkv, 3, axis=1)                      # each (B, E, C, H, W)

    def to_heads(a):
        return a.reshape(B, NH, d, N)
    q, k, v = to_heads(q), to_heads(k), to_heads(v)

    eps = 1e-12
    q_n = q / jnp.maximum(jnp.linalg.norm(q, axis=-1, keepdims=True), eps)
    k_n = k / jnp.maximum(jnp.linalg.norm(k, axis=-1, keepdims=True), eps)

    attn = jnp.einsum("bhdn,bhen->bhde", q_n, k_n, precision=hi)
    attn = attn * params["t"][None, :, None, None]
    p = jax.nn.softmax(attn, axis=-1)
    out = jnp.einsum("bhde,bhen->bhdn", p, v, precision=hi)  # (B, NH, d, N)

    x_ = out.reshape(B, E, C, H, W)
    x_ = jnp.transpose(x_, (0, 2, 1, 3, 4))                  # (B, C, E, H, W)
    y = jnp.einsum("bcehw,ce->bchw", x_, params["w_fus"], precision=hi) \
        + params["b_fus"][None, :, None, None]
    return y


# ----------------------------- main ------------------------------------------

if __name__ == "__main__":
    # NH = num_chans*E = 4, head dim d = C//num_chans = 8 (sublane-aligned),
    # N = H*W = 256 (lane-dense multiple of 128).
    B, embed_dim, H, W = 2, 16, 16, 16
    num_chans, expan_att_chans = 2, 2

    key = jax.random.PRNGKey(0)
    kx, kp = jax.random.split(key)
    x = jax.random.normal(kx, (B, embed_dim, H, W), jnp.float32)
    params = init_params(kp, embed_dim, num_chans, expan_att_chans)

    y = channel_attention_forward(x, params, num_chans, expan_att_chans)
    y = jax.block_until_ready(y)

    y_ref = channel_attention_ref(x, params, num_chans, expan_att_chans)
    y_ref = jax.block_until_ready(y_ref)

    assert y.shape == (B, embed_dim, H, W)
    max_diff = jnp.max(jnp.abs(y - y_ref))
    assert jnp.allclose(y, y_ref, atol=1e-4, rtol=1e-4), f"max abs diff {max_diff}"

    print("KERNEL_OK")
</pallas_src>

<mosaic_0001>
module attributes {stable_mosaic.version = 11 : i64} {
  func.func @_channel_attn_fused_kernel(%arg0: i32, %arg1: memref<4xf32, #tpu.memory_space<smem>>, %arg2: memref<1x16x256xf32, #tpu.memory_space<vmem>>, %arg3: memref<16x6xf32, #tpu.memory_space<vmem>>, %arg4: memref<16x6xf32, #tpu.memory_space<vmem>>, %arg5: memref<16x2xf32, #tpu.memory_space<vmem>>, %arg6: memref<16x1xf32, #tpu.memory_space<vmem>>, %arg7: memref<1x16x256xf32, #tpu.memory_space<vmem>>) attributes {dimension_semantics = [#tpu.dimension_semantics<parallel>], iteration_bounds = array<i64: 2>, scalar_prefetch = 0 : i64, scratch_operands = 0 : i64, tpu.core_type = #tpu.core_type<tc>, window_params = [{transform_indices = @transform_0, window_bounds = array<i64: 4>}, {transform_indices = @transform_1, window_bounds = array<i64: 1, 16, 256>}, {pipeline_mode = #tpu.pipeline_mode<synchronous>, transform_indices = @transform_2, window_bounds = array<i64: 16, 6>}, {pipeline_mode = #tpu.pipeline_mode<synchronous>, transform_indices = @transform_3, window_bounds = array<i64: 16, 6>}, {pipeline_mode = #tpu.pipeline_mode<synchronous>, transform_indices = @transform_4, window_bounds = array<i64: 16, 2>}, {pipeline_mode = #tpu.pipeline_mode<synchronous>, transform_indices = @transform_5, window_bounds = array<i64: 16, 1>}, {transform_indices = @transform_6, window_bounds = array<i64: 1, 16, 256>}]} {
    %c0 = arith.constant 0 : index
    %c0_0 = arith.constant 0 : index
    %c0_1 = arith.constant 0 : index
    %0 = vector.load %arg2[%c0, %c0_0, %c0_1] : memref<1x16x256xf32, #tpu.memory_space<vmem>>, vector<1x8x256xf32>
    %1 = vector.shape_cast %0 : vector<1x8x256xf32> to vector<8x256xf32>
    %c0_2 = arith.constant 0 : index
    %c0_3 = arith.constant 0 : index
    %2 = vector.load %arg3[%c0_2, %c0_3] : memref<16x6xf32, #tpu.memory_space<vmem>>, vector<8x1xf32>
    %c0_4 = arith.constant 0 : index
    %c0_5 = arith.constant 0 : index
    %3 = vector.load %arg4[%c0_4, %c0_5] : memref<16x6xf32, #tpu.memory_space<vmem>>, vector<8x1xf32>
    %c0_6 = arith.constant 0 : index
    %c2 = arith.constant 2 : index
    %4 = vector.load %arg3[%c0_6, %c2] : memref<16x6xf32, #tpu.memory_space<vmem>>, vector<8x1xf32>
    %c0_7 = arith.constant 0 : index
    %c2_8 = arith.constant 2 : index
    %5 = vector.load %arg4[%c0_7, %c2_8] : memref<16x6xf32, #tpu.memory_space<vmem>>, vector<8x1xf32>
    %c0_9 = arith.constant 0 : index
    %c4 = arith.constant 4 : index
    %6 = vector.load %arg3[%c0_9, %c4] : memref<16x6xf32, #tpu.memory_space<vmem>>, vector<8x1xf32>
    %c0_10 = arith.constant 0 : index
    %c4_11 = arith.constant 4 : index
    %7 = vector.load %arg4[%c0_10, %c4_11] : memref<16x6xf32, #tpu.memory_space<vmem>>, vector<8x1xf32>
    %8 = vector.broadcast %2 : vector<8x1xf32> to vector<8x256xf32>
    %9 = arith.mulf %1, %8 : vector<8x256xf32>
    %10 = vector.broadcast %3 : vector<8x1xf32> to vector<8x256xf32>
    %11 = arith.addf %9, %10 : vector<8x256xf32>
    %12 = vector.broadcast %4 : vector<8x1xf32> to vector<8x256xf32>
    %13 = arith.mulf %1, %12 : vector<8x256xf32>
    %14 = vector.broadcast %5 : vector<8x1xf32> to vector<8x256xf32>
    %15 = arith.addf %13, %14 : vector<8x256xf32>
    %16 = vector.broadcast %6 : vector<8x1xf32> to vector<8x256xf32>
    %17 = arith.mulf %1, %16 : vector<8x256xf32>
    %18 = vector.broadcast %7 : vector<8x1xf32> to vector<8x256xf32>
    %19 = arith.addf %17, %18 : vector<8x256xf32>
    %20 = arith.mulf %11, %11 : vector<8x256xf32>
    %cst = arith.constant dense<0.000000e+00> : vector<8xf32>
    %21 = vector.multi_reduction <add>, %20, %cst [1] : vector<8x256xf32> to vector<8xf32>
    %22 = vector.shape_cast %21 : vector<8xf32> to vector<8x1xf32>
    %cst_12 = arith.constant 1.000000e-24 : f32
    %23 = vector.broadcast %cst_12 : f32 to vector<8x1xf32>
    %24 = arith.maximumf %22, %23 : vector<8x1xf32>
    %25 = math.rsqrt %24 : vector<8x1xf32>
    %26 = vector.broadcast %25 : vector<8x1xf32> to vector<8x256xf32>
    %27 = arith.mulf %11, %26 : vector<8x256xf32>
    %28 = arith.mulf %15, %15 : vector<8x256xf32>
    %cst_13 = arith.constant dense<0.000000e+00> : vector<8xf32>
    %29 = vector.multi_reduction <add>, %28, %cst_13 [1] : vector<8x256xf32> to vector<8xf32>
    %30 = vector.shape_cast %29 : vector<8xf32> to vector<8x1xf32>
    %cst_14 = arith.constant 1.000000e-24 : f32
    %31 = vector.broadcast %cst_14 : f32 to vector<8x1xf32>
    %32 = arith.maximumf %30, %31 : vector<8x1xf32>
    %33 = math.rsqrt %32 : vector<8x1xf32>
    %34 = vector.broadcast %33 : vector<8x1xf32> to vector<8x256xf32>
    %35 = arith.mulf %15, %34 : vector<8x256xf32>
    %cst_15 = arith.constant dense<0.000000e+00> : vector<8x8xf32>
    %36 = tpu.matmul %27, %35, %cst_15 {dimension_numbers = #tpu.dot_dimension_numbers<[1], [1], [0], [0], [0, 0, 1, 0], [], []>} : vector<8x256xf32>, vector<8x256xf32>, vector<8x8xf32> -> vector<8x8xf32>
    %c0_16 = arith.constant 0 : index
    %37 = memref.load %arg1[%c0_16] : memref<4xf32, #tpu.memory_space<smem>>
    %38 = vector.broadcast %37 : f32 to vector<8x8xf32>
    %39 = arith.mulf %36, %38 : vector<8x8xf32>
    %cst_17 = arith.constant dense<0xFF800000> : vector<8xf32>
    %40 = vector.multi_reduction <maximumf>, %39, %cst_17 [1] : vector<8x8xf32> to vector<8xf32>
    %41 = vector.shape_cast %40 : vector<8xf32> to vector<8x1xf32>
    %42 = vector.broadcast %41 : vector<8x1xf32> to vector<8x8xf32>
    %43 = arith.subf %39, %42 : vector<8x8xf32>
    %44 = math.exp %43 : vector<8x8xf32>
    %cst_18 = arith.constant dense<0.000000e+00> : vector<8xf32>
    %45 = vector.multi_reduction <add>, %44, %cst_18 [1] : vector<8x8xf32> to vector<8xf32>
    %46 = vector.shape_cast %45 : vector<8xf32> to vector<8x1xf32>
    %47 = tpu.reciprocal %46 : vector<8x1xf32> -> vector<8x1xf32>
    %48 = vector.broadcast %47 : vector<8x1xf32> to vector<8x8xf32>
    %49 = arith.mulf %44, %48 : vector<8x8xf32>
    %cst_19 = arith.constant dense<0.000000e+00> : vector<8x256xf32>
    %50 = tpu.matmul %49, %19, %cst_19 {dimension_numbers = #tpu.dot_dimension_numbers<[1], [0], [0], [1], [0, 0, 1, 1], [], []>} : vector<8x8xf32>, vector<8x256xf32>, vector<8x256xf32> -> vector<8x256xf32>
    %c0_20 = arith.constant 0 : index
    %c0_21 = arith.constant 0 : index
    %51 = vector.load %arg5[%c0_20, %c0_21] : memref<16x2xf32, #tpu.memory_space<vmem>>, vector<8x1xf32>
    %52 = vector.broadcast %51 : vector<8x1xf32> to vector<8x256xf32>
    %53 = arith.mulf %50, %52 : vector<8x256xf32>
    %c0_22 = arith.constant 0 : index
    %c1 = arith.constant 1 : index
    %54 = vector.load %arg3[%c0_22, %c1] : memref<16x6xf32, #tpu.memory_space<vmem>>, vector<8x1xf32>
    %c0_23 = arith.constant 0 : index
    %c1_24 = arith.constant 1 : index
    %55 = vector.load %arg4[%c0_23, %c1_24] : memref<16x6xf32, #tpu.memory_space<vmem>>, vector<8x1xf32>
    %c0_25 = arith.constant 0 : index
    %c3 = arith.constant 3 : index
    %56 = vector.load %arg3[%c0_25, %c3] : memref<16x6xf32, #tpu.memory_space<vmem>>, vector<8x1xf32>
    %c0_26 = arith.constant 0 : index
    %c3_27 = arith.constant 3 : index
    %57 = vector.load %arg4[%c0_26, %c3_27] : memref<16x6xf32, #tpu.memory_space<vmem>>, vector<8x1xf32>
    %c0_28 = arith.constant 0 : index
    %c5 = arith.constant 5 : index
    %58 = vector.load %arg3[%c0_28, %c5] : memref<16x6xf32, #tpu.memory_space<vmem>>, vector<8x1xf32>
    %c0_29 = arith.constant 0 : index
    %c5_30 = arith.constant 5 : index
    %59 = vector.load %arg4[%c0_29, %c5_30] : memref<16x6xf32, #tpu.memory_space<vmem>>, vector<8x1xf32>
    %60 = vector.broadcast %54 : vector<8x1xf32> to vector<8x256xf32>
    %61 = arith.mulf %1, %60 : vector<8x256xf32>
    %62 = vector.broadcast %55 : vector<8x1xf32> to vector<8x256xf32>
    %63 = arith.addf %61, %62 : vector<8x256xf32>
    %64 = vector.broadcast %56 : vector<8x1xf32> to vector<8x256xf32>
    %65 = arith.mulf %1, %64 : vector<8x256xf32>
    %66 = vector.broadcast %57 : vector<8x1xf32> to vector<8x256xf32>
    %67 = arith.addf %65, %66 : vector<8x256xf32>
    %68 = vector.broadcast %58 : vector<8x1xf32> to vector<8x256xf32>
    %69 = arith.mulf %1, %68 : vector<8x256xf32>
    %70 = vector.broadcast %59 : vector<8x1xf32> to vector<8x256xf32>
    %71 = arith.addf %69, %70 : vector<8x256xf32>
    %72 = arith.mulf %63, %63 : vector<8x256xf32>
    %cst_31 = arith.constant dense<0.000000e+00> : vector<8xf32>
    %73 = vector.multi_reduction <add>, %72, %cst_31 [1] : vector<8x256xf32> to vector<8xf32>
    %74 = vector.shape_cast %73 : vector<8xf32> to vector<8x1xf32>
    %cst_32 = arith.constant 1.000000e-24 : f32
    %75 = vector.broadcast %cst_32 : f32 to vector<8x1xf32>
    %76 = arith.maximumf %74, %75 : vector<8x1xf32>
    %77 = math.rsqrt %76 : vector<8x1xf32>
    %78 = vector.broadcast %77 : vector<8x1xf32> to vector<8x256xf32>
    %79 = arith.mulf %63, %78 : vector<8x256xf32>
    %80 = arith.mulf %67, %67 : vector<8x256xf32>
    %cst_33 = arith.constant dense<0.000000e+00> : vector<8xf32>
    %81 = vector.multi_reduction <add>, %80, %cst_33 [1] : vector<8x256xf32> to vector<8xf32>
    %82 = vector.shape_cast %81 : vector<8xf32> to vector<8x1xf32>
    %cst_34 = arith.constant 1.000000e-24 : f32
    %83 = vector.broadcast %cst_34 : f32 to vector<8x1xf32>
    %84 = arith.maximumf %82, %83 : vector<8x1xf32>
    %85 = math.rsqrt %84 : vector<8x1xf32>
    %86 = vector.broadcast %85 : vector<8x1xf32> to vector<8x256xf32>
    %87 = arith.mulf %67, %86 : vector<8x256xf32>
    %cst_35 = arith.constant dense<0.000000e+00> : vector<8x8xf32>
    %88 = tpu.matmul %79, %87, %cst_35 {dimension_numbers = #tpu.dot_dimension_numbers<[1], [1], [0], [0], [0, 0, 1, 0], [], []>} : vector<8x256xf32>, vector<8x256xf32>, vector<8x8xf32> -> vector<8x8xf32>
    %c2_36 = arith.constant 2 : index
    %89 = memref.load %arg1[%c2_36] : memref<4xf32, #tpu.memory_space<smem>>
    %90 = vector.broadcast %89 : f32 to vector<8x8xf32>
    %91 = arith.mulf %88, %90 : vector<8x8xf32>
    %cst_37 = arith.constant dense<0xFF800000> : vector<8xf32>
    %92 = vector.multi_reduction <maximumf>, %91, %cst_37 [1] : vector<8x8xf32> to vector<8xf32>
    %93 = vector.shape_cast %92 : vector<8xf32> to vector<8x1xf32>
    %94 = vector.broadcast %93 : vector<8x1xf32> to vector<8x8xf32>
    %95 = arith.subf %91, %94 : vector<8x8xf32>
    %96 = math.exp %95 : vector<8x8xf32>
    %cst_38 = arith.constant dense<0.000000e+00> : vector<8xf32>
    %97 = vector.multi_reduction <add>, %96, %cst_38 [1] : vector<8x8xf32> to vector<8xf32>
    %98 = vector.shape_cast %97 : vector<8xf32> to vector<8x1xf32>
    %99 = tpu.reciprocal %98 : vector<8x1xf32> -> vector<8x1xf32>
    %100 = vector.broadcast %99 : vector<8x1xf32> to vector<8x8xf32>
    %101 = arith.mulf %96, %100 : vector<8x8xf32>
    %cst_39 = arith.constant dense<0.000000e+00> : vector<8x256xf32>
    %102 = tpu.matmul %101, %71, %cst_39 {dimension_numbers = #tpu.dot_dimension_numbers<[1], [0], [0], [1], [0, 0, 1, 1], [], []>} : vector<8x8xf32>, vector<8x256xf32>, vector<8x256xf32> -> vector<8x256xf32>
    %c0_40 = arith.constant 0 : index
    %c1_41 = arith.constant 1 : index
    %103 = vector.load %arg5[%c0_40, %c1_41] : memref<16x2xf32, #tpu.memory_space<vmem>>, vector<8x1xf32>
    %104 = vector.broadcast %103 : vector<8x1xf32> to vector<8x256xf32>
    %105 = arith.mulf %102, %104 : vector<8x256xf32>
    %106 = arith.addf %53, %105 : vector<8x256xf32>
    %c0_42 = arith.constant 0 : index
    %c0_43 = arith.constant 0 : index
    %107 = vector.load %arg6[%c0_42, %c0_43] : memref<16x1xf32, #tpu.memory_space<vmem>>, vector<8x1xf32>
    %108 = vector.broadcast %107 : vector<8x1xf32> to vector<8x256xf32>
    %109 = arith.addf %106, %108 : vector<8x256xf32>
    %c0_44 = arith.constant 0 : index
    %c0_45 = arith.constant 0 : index
    %c0_46 = arith.constant 0 : index
    %110 = vector.load %arg7[%c0_44, %c0_45, %c0_46] : memref<1x16x256xf32, #tpu.memory_space<vmem>>, vector<1x8x256xf32>
    %111 = vector.shape_cast %110 : vector<1x8x256xf32> to vector<8x256xf32>
    %112 = vector.shape_cast %109 : vector<8x256xf32> to vector<1x8x256xf32>
    tpu.vector_store %arg7[%c0_44, %c0_45, %c0_46], %112 {strides = array<i32>} : memref<1x16x256xf32, #tpu.memory_space<vmem>>, vector<1x8x256xf32>,
    %c0_47 = arith.constant 0 : index
    %c8 = arith.constant 8 : index
    %c0_48 = arith.constant 0 : index
    %113 = vector.load %arg2[%c0_47, %c8, %c0_48] : memref<1x16x256xf32, #tpu.memory_space<vmem>>, vector<1x8x256xf32>
    %114 = vector.shape_cast %113 : vector<1x8x256xf32> to vector<8x256xf32>
    %c8_49 = arith.constant 8 : index
    %c0_50 = arith.constant 0 : index
    %115 = vector.load %arg3[%c8_49, %c0_50] : memref<16x6xf32, #tpu.memory_space<vmem>>, vector<8x1xf32>
    %c8_51 = arith.constant 8 : index
    %c0_52 = arith.constant 0 : index
    %116 = vector.load %arg4[%c8_51, %c0_52] : memref<16x6xf32, #tpu.memory_space<vmem>>, vector<8x1xf32>
    %c8_53 = arith.constant 8 : index
    %c2_54 = arith.constant 2 : index
    %117 = vector.load %arg3[%c8_53, %c2_54] : memref<16x6xf32, #tpu.memory_space<vmem>>, vector<8x1xf32>
    %c8_55 = arith.constant 8 : index
    %c2_56 = arith.constant 2 : index
    %118 = vector.load %arg4[%c8_55, %c2_56] : memref<16x6xf32, #tpu.memory_space<vmem>>, vector<8x1xf32>
    %c8_57 = arith.constant 8 : index
    %c4_58 = arith.constant 4 : index
    %119 = vector.load %arg3[%c8_57, %c4_58] : memref<16x6xf32, #tpu.memory_space<vmem>>, vector<8x1xf32>
    %c8_59 = arith.constant 8 : index
    %c4_60 = arith.constant 4 : index
    %120 = vector.load %arg4[%c8_59, %c4_60] : memref<16x6xf32, #tpu.memory_space<vmem>>, vector<8x1xf32>
    %121 = vector.broadcast %115 : vector<8x1xf32> to vector<8x256xf32>
    %122 = arith.mulf %114, %121 : vector<8x256xf32>
    %123 = vector.broadcast %116 : vector<8x1xf32> to vector<8x256xf32>
    %124 = arith.addf %122, %123 : vector<8x256xf32>
    %125 = vector.broadcast %117 : vector<8x1xf32> to vector<8x256xf32>
    %126 = arith.mulf %114, %125 : vector<8x256xf32>
    %127 = vector.broadcast %118 : vector<8x1xf32> to vector<8x256xf32>
    %128 = arith.addf %126, %127 : vector<8x256xf32>
    %129 = vector.broadcast %119 : vector<8x1xf32> to vector<8x256xf32>
    %130 = arith.mulf %114, %129 : vector<8x256xf32>
    %131 = vector.broadcast %120 : vector<8x1xf32> to vector<8x256xf32>
    %132 = arith.addf %130, %131 : vector<8x256xf32>
    %133 = arith.mulf %124, %124 : vector<8x256xf32>
    %cst_61 = arith.constant dense<0.000000e+00> : vector<8xf32>
    %134 = vector.multi_reduction <add>, %133, %cst_61 [1] : vector<8x256xf32> to vector<8xf32>
    %135 = vector.shape_cast %134 : vector<8xf32> to vector<8x1xf32>
    %cst_62 = arith.constant 1.000000e-24 : f32
    %136 = vector.broadcast %cst_62 : f32 to vector<8x1xf32>
    %137 = arith.maximumf %135, %136 : vector<8x1xf32>
    %138 = math.rsqrt %137 : vector<8x1xf32>
    %139 = vector.broadcast %138 : vector<8x1xf32> to vector<8x256xf32>
    %140 = arith.mulf %124, %139 : vector<8x256xf32>
    %141 = arith.mulf %128, %128 : vector<8x256xf32>
    %cst_63 = arith.constant dense<0.000000e+00> : vector<8xf32>
    %142 = vector.multi_reduction <add>, %141, %cst_63 [1] : vector<8x256xf32> to vector<8xf32>
    %143 = vector.shape_cast %142 : vector<8xf32> to vector<8x1xf32>
    %cst_64 = arith.constant 1.000000e-24 : f32
    %144 = vector.broadcast %cst_64 : f32 to vector<8x1xf32>
    %145 = arith.maximumf %143, %144 : vector<8x1xf32>
    %146 = math.rsqrt %145 : vector<8x1xf32>
    %147 = vector.broadcast %146 : vector<8x1xf32> to vector<8x256xf32>
    %148 = arith.mulf %128, %147 : vector<8x256xf32>
    %cst_65 = arith.constant dense<0.000000e+00> : vector<8x8xf32>
    %149 = tpu.matmul %140, %148, %cst_65 {dimension_numbers = #tpu.dot_dimension_numbers<[1], [1], [0], [0], [0, 0, 1, 0], [], []>} : vector<8x256xf32>, vector<8x256xf32>, vector<8x8xf32> -> vector<8x8xf32>
    %c1_66 = arith.constant 1 : index
    %150 = memref.load %arg1[%c1_66] : memref<4xf32, #tpu.memory_space<smem>>
    %151 = vector.broadcast %150 : f32 to vector<8x8xf32>
    %152 = arith.mulf %149, %151 : vector<8x8xf32>
    %cst_67 = arith.constant dense<0xFF800000> : vector<8xf32>
    %153 = vector.multi_reduction <maximumf>, %152, %cst_67 [1] : vector<8x8xf32> to vector<8xf32>
    %154 = vector.shape_cast %153 : vector<8xf32> to vector<8x1xf32>
    %155 = vector.broadcast %154 : vector<8x1xf32> to vector<8x8xf32>
    %156 = arith.subf %152, %155 : vector<8x8xf32>
    %157 = math.exp %156 : vector<8x8xf32>
    %cst_68 = arith.constant dense<0.000000e+00> : vector<8xf32>
    %158 = vector.multi_reduction <add>, %157, %cst_68 [1] : vector<8x8xf32> to vector<8xf32>
    %159 = vector.shape_cast %158 : vector<8xf32> to vector<8x1xf32>
    %160 = tpu.reciprocal %159 : vector<8x1xf32> -> vector<8x1xf32>
    %161 = vector.broadcast %160 : vector<8x1xf32> to vector<8x8xf32>
    %162 = arith.mulf %157, %161 : vector<8x8xf32>
    %cst_69 = arith.constant dense<0.000000e+00> : vector<8x256xf32>
    %163 = tpu.matmul %162, %132, %cst_69 {dimension_numbers = #tpu.dot_dimension_numbers<[1], [0], [0], [1], [0, 0, 1, 1], [], []>} : vector<8x8xf32>, vector<8x256xf32>, vector<8x256xf32> -> vector<8x256xf32>
    %c8_70 = arith.constant 8 : index
    %c0_71 = arith.constant 0 : index
    %164 = vector.load %arg5[%c8_70, %c0_71] : memref<16x2xf32, #tpu.memory_space<vmem>>, vector<8x1xf32>
    %165 = vector.broadcast %164 : vector<8x1xf32> to vector<8x256xf32>
    %166 = arith.mulf %163, %165 : vector<8x256xf32>
    %c8_72 = arith.constant 8 : index
    %c1_73 = arith.constant 1 : index
    %167 = vector.load %arg3[%c8_72, %c1_73] : memref<16x6xf32, #tpu.memory_space<vmem>>, vector<8x1xf32>
    %c8_74 = arith.constant 8 : index
    %c1_75 = arith.constant 1 : index
    %168 = vector.load %arg4[%c8_74, %c1_75] : memref<16x6xf32, #tpu.memory_space<vmem>>, vector<8x1xf32>
    %c8_76 = arith.constant 8 : index
    %c3_77 = arith.constant 3 : index
    %169 = vector.load %arg3[%c8_76, %c3_77] : memref<16x6xf32, #tpu.memory_space<vmem>>, vector<8x1xf32>
    %c8_78 = arith.constant 8 : index
    %c3_79 = arith.constant 3 : index
    %170 = vector.load %arg4[%c8_78, %c3_79] : memref<16x6xf32, #tpu.memory_space<vmem>>, vector<8x1xf32>
    %c8_80 = arith.constant 8 : index
    %c5_81 = arith.constant 5 : index
    %171 = vector.load %arg3[%c8_80, %c5_81] : memref<16x6xf32, #tpu.memory_space<vmem>>, vector<8x1xf32>
    %c8_82 = arith.constant 8 : index
    %c5_83 = arith.constant 5 : index
    %172 = vector.load %arg4[%c8_82, %c5_83] : memref<16x6xf32, #tpu.memory_space<vmem>>, vector<8x1xf32>
    %173 = vector.broadcast %167 : vector<8x1xf32> to vector<8x256xf32>
    %174 = arith.mulf %114, %173 : vector<8x256xf32>
    %175 = vector.broadcast %168 : vector<8x1xf32> to vector<8x256xf32>
    %176 = arith.addf %174, %175 : vector<8x256xf32>
    %177 = vector.broadcast %169 : vector<8x1xf32> to vector<8x256xf32>
    %178 = arith.mulf %114, %177 : vector<8x256xf32>
    %179 = vector.broadcast %170 : vector<8x1xf32> to vector<8x256xf32>
    %180 = arith.addf %178, %179 : vector<8x256xf32>
    %181 = vector.broadcast %171 : vector<8x1xf32> to vector<8x256xf32>
    %182 = arith.mulf %114, %181 : vector<8x256xf32>
    %183 = vector.broadcast %172 : vector<8x1xf32> to vector<8x256xf32>
    %184 = arith.addf %182, %183 : vector<8x256xf32>
    %185 = arith.mulf %176, %176 : vector<8x256xf32>
    %cst_84 = arith.constant dense<0.000000e+00> : vector<8xf32>
    %186 = vector.multi_reduction <add>, %185, %cst_84 [1] : vector<8x256xf32> to vector<8xf32>
    %187 = vector.shape_cast %186 : vector<8xf32> to vector<8x1xf32>
    %cst_85 = arith.constant 1.000000e-24 : f32
    %188 = vector.broadcast %cst_85 : f32 to vector<8x1xf32>
    %189 = arith.maximumf %187, %188 : vector<8x1xf32>
    %190 = math.rsqrt %189 : vector<8x1xf32>
    %191 = vector.broadcast %190 : vector<8x1xf32> to vector<8x256xf32>
    %192 = arith.mulf %176, %191 : vector<8x256xf32>
    %193 = arith.mulf %180, %180 : vector<8x256xf32>
    %cst_86 = arith.constant dense<0.000000e+00> : vector<8xf32>
    %194 = vector.multi_reduction <add>, %193, %cst_86 [1] : vector<8x256xf32> to vector<8xf32>
    %195 = vector.shape_cast %194 : vector<8xf32> to vector<8x1xf32>
    %cst_87 = arith.constant 1.000000e-24 : f32
    %196 = vector.broadcast %cst_87 : f32 to vector<8x1xf32>
    %197 = arith.maximumf %195, %196 : vector<8x1xf32>
    %198 = math.rsqrt %197 : vector<8x1xf32>
    %199 = vector.broadcast %198 : vector<8x1xf32> to vector<8x256xf32>
    %200 = arith.mulf %180, %199 : vector<8x256xf32>
    %cst_88 = arith.constant dense<0.000000e+00> : vector<8x8xf32>
    %201 = tpu.matmul %192, %200, %cst_88 {dimension_numbers = #tpu.dot_dimension_numbers<[1], [1], [0], [0], [0, 0, 1, 0], [], []>} : vector<8x256xf32>, vector<8x256xf32>, vector<8x8xf32> -> vector<8x8xf32>
    %c3_89 = arith.constant 3 : index
    %202 = memref.load %arg1[%c3_89] : memref<4xf32, #tpu.memory_space<smem>>
    %203 = vector.broadcast %202 : f32 to vector<8x8xf32>
    %204 = arith.mulf %201, %203 : vector<8x8xf32>
    %cst_90 = arith.constant dense<0xFF800000> : vector<8xf32>
    %205 = vector.multi_reduction <maximumf>, %204, %cst_90 [1] : vector<8x8xf32> to vector<8xf32>
    %206 = vector.shape_cast %205 : vector<8xf32> to vector<8x1xf32>
    %207 = vector.broadcast %206 : vector<8x1xf32> to vector<8x8xf32>
    %208 = arith.subf %204, %207 : vector<8x8xf32>
    %209 = math.exp %208 : vector<8x8xf32>
    %cst_91 = arith.constant dense<0.000000e+00> : vector<8xf32>
    %210 = vector.multi_reduction <add>, %209, %cst_91 [1] : vector<8x8xf32> to vector<8xf32>
    %211 = vector.shape_cast %210 : vector<8xf32> to vector<8x1xf32>
    %212 = tpu.reciprocal %211 : vector<8x1xf32> -> vector<8x1xf32>
    %213 = vector.broadcast %212 : vector<8x1xf32> to vector<8x8xf32>
    %214 = arith.mulf %209, %213 : vector<8x8xf32>
    %cst_92 = arith.constant dense<0.000000e+00> : vector<8x256xf32>
    %215 = tpu.matmul %214, %184, %cst_92 {dimension_numbers = #tpu.dot_dimension_numbers<[1], [0], [0], [1], [0, 0, 1, 1], [], []>} : vector<8x8xf32>, vector<8x256xf32>, vector<8x256xf32> -> vector<8x256xf32>
    %c8_93 = arith.constant 8 : index
    %c1_94 = arith.constant 1 : index
    %216 = vector.load %arg5[%c8_93, %c1_94] : memref<16x2xf32, #tpu.memory_space<vmem>>, vector<8x1xf32>
    %217 = vector.broadcast %216 : vector<8x1xf32> to vector<8x256xf32>
    %218 = arith.mulf %215, %217 : vector<8x256xf32>
    %219 = arith.addf %166, %218 : vector<8x256xf32>
    %c8_95 = arith.constant 8 : index
    %c0_96 = arith.constant 0 : index
    %220 = vector.load %arg6[%c8_95, %c0_96] : memref<16x1xf32, #tpu.memory_space<vmem>>, vector<8x1xf32>
    %221 = vector.broadcast %220 : vector<8x1xf32> to vector<8x256xf32>
    %222 = arith.addf %219, %221 : vector<8x256xf32>
    %c0_97 = arith.constant 0 : index
    %c8_98 = arith.constant 8 : index
    %c0_99 = arith.constant 0 : index
    %223 = vector.load %arg7[%c0_97, %c8_98, %c0_99] : memref<1x16x256xf32, #tpu.memory_space<vmem>>, vector<1x8x256xf32>
    %224 = vector.shape_cast %223 : vector<1x8x256xf32> to vector<8x256xf32>
    %225 = vector.shape_cast %222 : vector<8x256xf32> to vector<1x8x256xf32>
    tpu.vector_store %arg7[%c0_97, %c8_98, %c0_99], %225 {strides = array<i32>} : memref<1x16x256xf32, #tpu.memory_space<vmem>>, vector<1x8x256xf32>,
    return
  }
  func.func @transform_0(%arg0: i32) -> i32 {
    %c0_i32 = arith.constant 0 : i32
    %c0_i32_0 = arith.constant 0 : i32
    return %c0_i32 : i32
  }
  func.func @transform_1(%arg0: i32) -> (i32, i32, i32) {
    %c0_i32 = arith.constant 0 : i32
    %c0_i32_0 = arith.constant 0 : i32
    %c0_i32_1 = arith.constant 0 : i32
    return %arg0, %c0_i32, %c0_i32_0 : i32, i32, i32
  }
  func.func @transform_2(%arg0: i32) -> (i32, i32) {
    %c0_i32 = arith.constant 0 : i32
    %c0_i32_0 = arith.constant 0 : i32
    %c0_i32_1 = arith.constant 0 : i32
    return %c0_i32, %c0_i32_0 : i32, i32
  }
  func.func @transform_3(%arg0: i32) -> (i32, i32) {
    %c0_i32 = arith.constant 0 : i32
    %c0_i32_0 = arith.constant 0 : i32
    %c0_i32_1 = arith.constant 0 : i32
    return %c0_i32, %c0_i32_0 : i32, i32
  }
  func.func @transform_4(%arg0: i32) -> (i32, i32) {
    %c0_i32 = arith.constant 0 : i32
    %c0_i32_0 = arith.constant 0 : i32
    %c0_i32_1 = arith.constant 0 : i32
    return %c0_i32, %c0_i32_0 : i32, i32
  }
  func.func @transform_5(%arg0: i32) -> (i32, i32) {
    %c0_i32 = arith.constant 0 : i32
    %c0_i32_0 = arith.constant 0 : i32
    %c0_i32_1 = arith.constant 0 : i32
    return %c0_i32, %c0_i32_0 : i32, i32
  }
  func.func @transform_6(%arg0: i32) -> (i32, i32, i32) {
    %c0_i32 = arith.constant 0 : i32
    %c0_i32_0 = arith.constant 0 : i32
    %c0_i32_1 = arith.constant 0 : i32
    return %arg0, %c0_i32, %c0_i32_0 : i32, i32, i32
  }
}

</mosaic_0001>

<llo_original>
// kernel: tpu_custom_call.1
$region0: #{tpu_custom_call.1}
  #allocation0 [shape = 'u32[]', space=smem, size = 0x4, offset = 0x4, fixed_abs, tag = 'smem constant byte address 0x4 - core index']
  #allocation1 [shape = 'u32[144,128]{1,0:T(1,128)}', space=vmem, size = 0x12000, scoped, tag = 'internal scratch']
  %s0 = inlined_call_operand.vmem [shape: f32[4], index: 0, kind: input, shape index: {}]
  %s1 = inlined_call_operand.vmem [shape: f32[2,16,256], index: 1, kind: input, shape index: {}]
  %s2 = inlined_call_operand.vmem [shape: f32[16,6], index: 2, kind: input, shape index: {}]
  %s3 = inlined_call_operand.vmem [shape: f32[16,6], index: 3, kind: input, shape index: {}]
  %s4 = inlined_call_operand.vmem [shape: f32[16,2], index: 4, kind: input, shape index: {}]
  %s5 = inlined_call_operand.vmem [shape: f32[16,1], index: 5, kind: input, shape index: {}]
  %s6 = inlined_call_operand.hbm [shape: f32[2,16,256], index: 6, kind: output, shape index: {}]
  %s7 = sld [smem:[#allocation0]]
  $region61: #{tpu_custom_call.1} parent=0
    _
  %s9 = ssub.s32 1, %s7
  %s10 = scalar_select 0, %s9, %s7
  $region1: #{tpu_custom_call.1} parent=0
    #allocation2 [shape = 'u8[512]{0}', space=smem, size = 0x200, scoped, tag = 'input window, operand 0, single buffered']
    #allocation3 [shape = 's32[2]{0}', space=sflag, size = 0x8, scoped, tag = 'scoped memory for tpu_custom_call.1']
    #allocation4 [shape = 's32[2]{0}', space=sflag, size = 0x8, scoped, tag = 'scoped memory for tpu_custom_call.1']
    #allocation5 [shape = 'u8[32768]{0}', space=vmem, size = 0x8000, scoped, tag = 'output window, operand 0']
    %11 = vsyncpa [#allocation4], 0
    %12 = vsyncpa [#allocation3], 0
    %s13 = scalar_lea.sflag [#allocation3], 1
    %14 = vsyncpa %s13, 0
    loop: start=0, step=1, limit=4
    $region2: #{tpu_custom_call.1} parent=1 // loop_pre_header
      _
    $region3: #{tpu_custom_call.1} parent=1 // loop_header
      %s16 = sphi 0, %s20
      %p17 = scmp.ge.s32.totalorder %s16, 4
      %s24 = sphi 0, %s24
      %s26 = sphi 0, %s24
      %s27 = sphi 0, %s26
      %s41 = sphi 0, %s27
      %s47 = sphi 0, %s49
      %s50 = sphi 0, %s47
      %s51 = sphi 0, %s50
      %s67 = sphi 0, %s51
      %s71 = sphi 0, %s71
      %s73 = sphi 0, %s71
      %s74 = sphi 0, %s73
      %s88 = sphi 0, %s74
      %s92 = sphi 0, %s92
      %s94 = sphi 0, %s92
      %s95 = sphi 0, %s94
      %s109 = sphi 0, %s95
      %s113 = sphi 0, %s113
      %s115 = sphi 0, %s113
      %s116 = sphi 0, %s115
      %s130 = sphi 0, %s116
      %s134 = sphi 0, %s134
      %s136 = sphi 0, %s134
      %s137 = sphi 0, %s136
      %s151 = sphi 0, %s137
      %s157 = sphi 0, %s159
      %s160 = sphi 0, %s157
      %s161 = sphi 0, %s160
      %s177 = sphi 0, %s161
    $region4: #{tpu_custom_call.1} parent=1 // loop_header_branch
      %19 = sbr.rel (%p17) target = $region8
    $region5: #{tpu_custom_call.1} parent=1 // loop_body
      %s21 = ssub.s32 %s16, 1
      %s22 = ssub.s32 %s16, 2
      %s23 = sadd.s32 %s16, 1
      %s25 = sadd.s32 %s24, 1
      %p28 = scmp.eq.s32.totalorder %s16, 1
      %p29 = scmp.ne.s32.totalorder %s24, %s26
      %p30 = scmp.eq.s32.totalorder %s16, 0
      %p31 = por %p29, %p30
      %p32 = scmp.ne.s32.totalorder %s24, %s26
      %p33 = scmp.eq.s32.totalorder %s21, 1
      %p34 = por %p32, %p33
      %p35 = scmp.ne.s32.totalorder %s26, %s27
      %p36 = scmp.eq.s32.totalorder %s21, 0
      %p37 = por %p35, %p36
      %p38 = scmp.ne.s32.totalorder %s26, %s27
      %p39 = scmp.eq.s32.totalorder %s22, 1
      %p40 = por %p38, %p39
      %p42 = scmp.ne.s32.totalorder %s27, %s41
      %p43 = scmp.eq.s32.totalorder %s22, 0
      %p44 = por %p42, %p43
      %s45 = ssub.s32 %s16, %s23
      %p46 = scmp.eq.s32.totalorder %s45, 0
      %s48 = sadd.s32 %s47, 1
      %s49 = scalar_select %p46, %s47, %s48
      %p52 = pneg %p46
      %p53 = scmp.eq.s32.totalorder %s16, 1
      %p54 = por %p52, %p53
      %p55 = scmp.ne.s32.totalorder %s47, %s50
      %p56 = scmp.eq.s32.totalorder %s16, 0
      %p57 = por %p55, %p56
      %p58 = scmp.ne.s32.totalorder %s47, %s50
      %p59 = scmp.eq.s32.totalorder %s21, 1
      %p60 = por %p58, %p59
      %p61 = scmp.ne.s32.totalorder %s50, %s51
      %p62 = scmp.eq.s32.totalorder %s21, 0
      %p63 = por %p61, %p62
      %p64 = scmp.ne.s32.totalorder %s50, %s51
      %p65 = scmp.eq.s32.totalorder %s22, 1
      %p66 = por %p64, %p65
      %p68 = scmp.ne.s32.totalorder %s51, %s67
      %p69 = scmp.eq.s32.totalorder %s22, 0
      %p70 = por %p68, %p69
      %s72 = sadd.s32 %s71, 1
      %p75 = scmp.eq.s32.totalorder %s16, 1
      %p76 = scmp.ne.s32.totalorder %s71, %s73
      %p77 = scmp.eq.s32.totalorder %s16, 0
      %p78 = por %p76, %p77
      %p79 = scmp.ne.s32.totalorder %s71, %s73
      %p80 = scmp.eq.s32.totalorder %s21, 1
      %p81 = por %p79, %p80
      %p82 = scmp.ne.s32.totalorder %s73, %s74
      %p83 = scmp.eq.s32.totalorder %s21, 0
      %p84 = por %p82, %p83
      %p85 = scmp.ne.s32.totalorder %s73, %s74
      %p86 = scmp.eq.s32.totalorder %s22, 1
      %p87 = por %p85, %p86
      %p89 = scmp.ne.s32.totalorder %s74, %s88
      %p90 = scmp.eq.s32.totalorder %s22, 0
      %p91 = por %p89, %p90
      %s93 = sadd.s32 %s92, 1
      %p96 = scmp.eq.s32.totalorder %s16, 1
      %p97 = scmp.ne.s32.totalorder %s92, %s94
      %p98 = scmp.eq.s32.totalorder %s16, 0
      %p99 = por %p97, %p98
      %p100 = scmp.ne.s32.totalorder %s92, %s94
      %p101 = scmp.eq.s32.totalorder %s21, 1
      %p102 = por %p100, %p101
      %p103 = scmp.ne.s32.totalorder %s94, %s95
      %p104 = scmp.eq.s32.totalorder %s21, 0
      %p105 = por %p103, %p104
      %p106 = scmp.ne.s32.totalorder %s94, %s95
      %p107 = scmp.eq.s32.totalorder %s22, 1
      %p108 = por %p106, %p107
      %p110 = scmp.ne.s32.totalorder %s95, %s109
      %p111 = scmp.eq.s32.totalorder %s22, 0
      %p112 = por %p110, %p111
      %s114 = sadd.s32 %s113, 1
      %p117 = scmp.eq.s32.totalorder %s16, 1
      %p118 = scmp.ne.s32.totalorder %s113, %s115
      %p119 = scmp.eq.s32.totalorder %s16, 0
      %p120 = por %p118, %p119
      %p121 = scmp.ne.s32.totalorder %s113, %s115
      %p122 = scmp.eq.s32.totalorder %s21, 1
      %p123 = por %p121, %p122
      %p124 = scmp.ne.s32.totalorder %s115, %s116
      %p125 = scmp.eq.s32.totalorder %s21, 0
      %p126 = por %p124, %p125
      %p127 = scmp.ne.s32.totalorder %s115, %s116
      %p128 = scmp.eq.s32.totalorder %s22, 1
      %p129 = por %p127, %p128
      %p131 = scmp.ne.s32.totalorder %s116, %s130
      %p132 = scmp.eq.s32.totalorder %s22, 0
      %p133 = por %p131, %p132
      %s135 = sadd.s32 %s134, 1
      %p138 = scmp.eq.s32.totalorder %s16, 1
      %p139 = scmp.ne.s32.totalorder %s134, %s136
      %p140 = scmp.eq.s32.totalorder %s16, 0
      %p141 = por %p139, %p140
      %p142 = scmp.ne.s32.totalorder %s134, %s136
      %p143 = scmp.eq.s32.totalorder %s21, 1
      %p144 = por %p142, %p143
      %p145 = scmp.ne.s32.totalorder %s136, %s137
      %p146 = scmp.eq.s32.totalorder %s21, 0
      %p147 = por %p145, %p146
      %p148 = scmp.ne.s32.totalorder %s136, %s137
      %p149 = scmp.eq.s32.totalorder %s22, 1
      %p150 = por %p148, %p149
      %p152 = scmp.ne.s32.totalorder %s137, %s151
      %p153 = scmp.eq.s32.totalorder %s22, 0
      %p154 = por %p152, %p153
      %s155 = ssub.s32 %s16, %s23
      %p156 = scmp.eq.s32.totalorder %s155, 0
      %s158 = sadd.s32 %s157, 1
      %s159 = scalar_select %p156, %s157, %s158
      %p162 = pneg %p156
      %p163 = scmp.eq.s32.totalorder %s16, 1
      %p164 = por %p162, %p163
      %p165 = scmp.ne.s32.totalorder %s157, %s160
      %p166 = scmp.eq.s32.totalorder %s16, 0
      %p167 = por %p165, %p166
      %p168 = scmp.ne.s32.totalorder %s157, %s160
      %p169 = scmp.eq.s32.totalorder %s21, 1
      %p170 = por %p168, %p169
      %p171 = scmp.ne.s32.totalorder %s160, %s161
      %p172 = scmp.eq.s32.totalorder %s21, 0
      %p173 = por %p171, %p172
      %p174 = scmp.ne.s32.totalorder %s160, %s161
      %p175 = scmp.eq.s32.totalorder %s22, 1
      %p176 = por %p174, %p175
      %p178 = scmp.ne.s32.totalorder %s161, %s177
      %p179 = scmp.eq.s32.totalorder %s22, 0
      %p180 = por %p178, %p179
      %p181 = scmp.le.s32.totalorder 1, %s16
      %p182 = scmp.lt.s32.totalorder %s16, 3
      %p183 = pnand %p181, %p182
      %p184 = pneg %p183
      // Predicated region
      $region9: #{tpu_custom_call.1} parent=5 // pred_check
        _
      $region10: #{tpu_custom_call.1} parent=5 // pred_check_branch
        %186 = sbr.rel (%p183) target = $region12
      $region11: #{tpu_custom_call.1} parent=5 // pred_region
        %s187 = ssub.s32 %s16, 1
        // Predicated region
        $region13: #{tpu_custom_call.1} parent=11 // pred_check
          %p188 = pneg %p37
        $region14: #{tpu_custom_call.1} parent=11 // pred_check_branch
          %190 = sbr.rel (%p188) target = $region16
        $region15: #{tpu_custom_call.1} parent=11 // pred_region
          %s192 = ssub.s32 16, 16
          %193 = vsyncadd [#allocation4], %s192
          %s195 = sshll.u32 %s0, 4
          %s196 = int_to_ptr.vmem [resolvable:$true] %s195
          %198 = dma.vmem_to_smem %s196, 16, [#allocation2], [#allocation4]
        $region16: #{tpu_custom_call.1} parent=11 // pred_fallthru
          _
        // Predicated region
        $region17: #{tpu_custom_call.1} parent=11 // pred_check
          %p199 = pneg %p84
        $region18: #{tpu_custom_call.1} parent=11 // pred_check_branch
          %201 = sbr.rel (%p199) target = $region20
        $region19: #{tpu_custom_call.1} parent=11 // pred_region
          _
        $region20: #{tpu_custom_call.1} parent=11 // pred_fallthru
          _
        // Predicated region
        $region21: #{tpu_custom_call.1} parent=11 // pred_check
          %p202 = pneg %p105
        $region22: #{tpu_custom_call.1} parent=11 // pred_check_branch
          %204 = sbr.rel (%p202) target = $region24
        $region23: #{tpu_custom_call.1} parent=11 // pred_region
          _
        $region24: #{tpu_custom_call.1} parent=11 // pred_fallthru
          _
        // Predicated region
        $region25: #{tpu_custom_call.1} parent=11 // pred_check
          %p205 = pneg %p126
        $region26: #{tpu_custom_call.1} parent=11 // pred_check_branch
          %207 = sbr.rel (%p205) target = $region28
        $region27: #{tpu_custom_call.1} parent=11 // pred_region
          _
        $region28: #{tpu_custom_call.1} parent=11 // pred_fallthru
          _
        // Predicated region
        $region29: #{tpu_custom_call.1} parent=11 // pred_check
          %p208 = pneg %p147
        $region30: #{tpu_custom_call.1} parent=11 // pred_check_branch
          %210 = sbr.rel (%p208) target = $region32
        $region31: #{tpu_custom_call.1} parent=11 // pred_region
          _
        $region32: #{tpu_custom_call.1} parent=11 // pred_fallthru
          _
      $region12: #{tpu_custom_call.1} parent=5 // pred_fallthru
        _
      %p211 = scmp.lt.s32.totalorder %s16, 2
      // Predicated region
      $region33: #{tpu_custom_call.1} parent=5 // pred_check
        %p212 = pneg %p211
      $region34: #{tpu_custom_call.1} parent=5 // pred_check_branch
        %214 = sbr.rel (%p212) target = $region36
      $region35: #{tpu_custom_call.1} parent=5 // pred_region
        // Predicated region
        $region37: #{tpu_custom_call.1} parent=35 // pred_check
          %p215 = pneg %p57
        $region38: #{tpu_custom_call.1} parent=35 // pred_check_branch
          %217 = sbr.rel (%p215) target = $region40
        $region39: #{tpu_custom_call.1} parent=35 // pred_region
          %p218 = scmp.lt.s32.totalorder %s16, 1
          %s219 = scalar_select %p218, %s16, 1
          %s220 = smul.addr %s219, 4
          %s221 = smul.addr %s220, 8
          %s222 = scalar_lea.vmem %s1, %s221
        $region40: #{tpu_custom_call.1} parent=35 // pred_fallthru
          _
      $region36: #{tpu_custom_call.1} parent=5 // pred_fallthru
        _
      %p223 = scmp.le.s32.totalorder 1, %s16
      %p224 = scmp.lt.s32.totalorder %s16, 3
      %p225 = pnand %p223, %p224
      %p226 = pneg %p225
      // Predicated region
      $region41: #{tpu_custom_call.1} parent=5 // pred_check
        _
      $region42: #{tpu_custom_call.1} parent=5 // pred_check_branch
        %228 = sbr.rel (%p225) target = $region44
      $region43: #{tpu_custom_call.1} parent=5 // pred_region
        %s229 = ssub.s32 %s16, 1
        // Predicated region
        $region45: #{tpu_custom_call.1} parent=43 // pred_check
          %p230 = pneg %p37
        $region46: #{tpu_custom_call.1} parent=43 // pred_check_branch
          %232 = sbr.rel (%p230) target = $region48
        $region47: #{tpu_custom_call.1} parent=43 // pred_region
          %233 = dma.done [#allocation4], 16
        $region48: #{tpu_custom_call.1} parent=43 // pred_fallthru
          _
        %234 = sfence
        %p235 = pneg %p37
        %p236 = pneg %p34
        %p237 = scmp.lt.s32.totalorder %s21, 1
        %s238 = scalar_select %p237, %s21, 1
        %s239 = smul.addr %s238, 4
        %s240 = smul.addr %s239, 8
        %s241 = scalar_lea.vmem %s1, %s240
        %p242 = pneg %p63
        %p243 = pneg %p60
        %p244 = pneg %p84
        %p245 = pneg %p81
        %p246 = pneg %p105
        %p247 = pneg %p102
        %p248 = pneg %p126
        %p249 = pneg %p123
        %p250 = pneg %p147
        %p251 = pneg %p144
        %p252 = pneg %p173
        %p253 = pneg %p170
        %s254 = sand.u32 %s160, 1
        %s255 = scalar_lea.sflag [#allocation3], %s254
        %s256 = sand.u32 %s160, 1
        %s257 = smul.addr %s256, 32
        %s258 = scalar_lea.vmem [#allocation5], %s257
        %p259 = scmp.lt.s32.totalorder %s21, 1
        %s260 = scalar_select %p259, %s21, 1
        %s261 = smul.addr %s260, 4
        %s262 = smul.addr %s261, 8
        %s263 = scalar_lea.vmem %s1, %s262
        %v264 = vld [vmem:[%s263] sm:$0xff]
        %v265 = vld [vmem:[%s263 + $0x8] sm:$0xff]
        %v266 = vld [vmem:[%s2] sm:$0xff]
        %v267 = vld [vmem:[%s3] sm:$0xff]
        %269 = vset.pattern.permute.xlu0 0
        %270 = vperm.xlu0 %269, %v266
        %v271 = vpop.permute.xlu0 %270
        %v273 = vmul.f32 %v264, %v271
        %v274 = vmul.f32 %v265, %v271
        %276 = vset.pattern.permute.xlu0 0
        %277 = vperm.xlu0 %276, %v267
        %v278 = vpop.permute.xlu0 %277
        %v280 = vadd.f32 %v273, %v278
        %v281 = vadd.f32 %v274, %v278
        %282 = vset.pattern.permute.xlu0 2
        %283 = vperm.xlu0 %282, %v266
        %v284 = vpop.permute.xlu0 %283
        %v286 = vmul.f32 %v264, %v284
        %v287 = vmul.f32 %v265, %v284
        %288 = vset.pattern.permute.xlu0 2
        %289 = vperm.xlu0 %288, %v267
        %v290 = vpop.permute.xlu0 %289
        %v292 = vadd.f32 %v286, %v290
        %v293 = vadd.f32 %v287, %v290
        %294 = vset.pattern.permute.xlu0 4
        %295 = vperm.xlu0 %294, %v266
        %v296 = vpop.permute.xlu0 %295
        %v298 = vmul.f32 %v264, %v296
        %v299 = vmul.f32 %v265, %v296
        %300 = vset.pattern.permute.xlu0 4
        %301 = vperm.xlu0 %300, %v267
        %v302 = vpop.permute.xlu0 %301
        %v304 = vadd.f32 %v298, %v302
        %v305 = vadd.f32 %v299, %v302
        %v306 = vmul.f32 %v280, %v280
        %v307 = vmul.f32 %v281, %v281
        %v308 = vadd.f32 %v306, %v307
        %309 = vadd.xlane.f32.xlu0 %v308
        %v310 = vpop.xlane.xlu0 %309
        %v311 = vmax.f32 %v310, 1e-24
        %v312 = vrsqrt.pop %v311
        %v313 = vmul.f32 %v280, %v312
        %v314 = vmul.f32 %v281, %v312
        %v315 = vmul.f32 %v292, %v292
        %v316 = vmul.f32 %v293, %v293
        %v317 = vadd.f32 %v315, %v316
        %318 = vadd.xlane.f32.xlu0 %v317
        %v319 = vpop.xlane.xlu0 %318
        %v320 = vmax.f32 %v319, 1e-24
        %v321 = vrsqrt.pop %v320
        %v322 = vmul.f32 %v292, %v321
        %v323 = vmul.f32 %v293, %v321
        %324 = vmatprep.subr.mxu0 %v323
        %325 = vmatpush1.xpose.msra.mxu0 %v322
        %326 = vmatprep.subr.mxu0 0.0
        %327 = vmatpush1.xpose.msra.mxu0 0.0
        %328 = vmatprep.subr.mxu0 0.0
        %329 = vmatpush1.xpose.msra.mxu0 0.0
        %330 = vmatprep.subr.mxu0 0.0
        %331 = vmatpush1.xpose.msra.mxu0 0.0
        %332 = vmatprep.subr.mxu0 0.0
        %333 = vmatpush1.xpose.msra.mxu0 0.0
        %334 = vmatprep.subr.mxu0 0.0
        %335 = vmatpush1.xpose.msra.mxu0 0.0
        %336 = vmatprep.subr.mxu0 0.0
        %337 = vmatpush1.xpose.msra.mxu0 0.0
        %338 = vmatprep.subr.mxu0 0.0
        %339 = vmatpush1.xpose.msra.mxu0 0.0
        %340 = vmatprep.subr.mxu0 0.0
        %341 = vmatpush1.xpose.msra.mxu0 0.0
        %342 = vmatprep.subr.mxu0 0.0
        %343 = vmatpush1.xpose.msra.mxu0 0.0
        %344 = vmatprep.subr.mxu0 0.0
        %345 = vmatpush1.xpose.msra.mxu0 0.0
        %346 = vmatprep.subr.mxu0 0.0
        %347 = vmatpush1.xpose.msra.mxu0 0.0
        %348 = vmatprep.subr.mxu0 0.0
        %349 = vmatpush1.xpose.msra.mxu0 0.0
        %350 = vmatprep.subr.mxu0 0.0
        %351 = vmatpush1.xpose.msra.mxu0 0.0
        %352 = vmatprep.subr.mxu0 0.0
        %353 = vmatpush1.xpose.msra.mxu0 0.0
        %354 = vmatprep.subr.mxu0 0.0
        %355 = vmatpush1.xpose.msra.mxu0 0.0
        %356 = vmatprep.subr.mxu0 0.0
        %357 = vmatpush1.xpose.msra.mxu0 0.0
        %358 = vmatprep.subr.mxu0 0.0
        %359 = vmatpush1.xpose.msra.mxu0 0.0
        %360 = vmatprep.subr.mxu0 0.0
        %361 = vmatpush1.xpose.msra.mxu0 0.0
        %362 = vmatprep.subr.mxu0 0.0
        %363 = vmatpush1.xpose.msra.mxu0 0.0
        %364 = vmatprep.subr.mxu0 0.0
        %365 = vmatpush1.xpose.msra.mxu0 0.0
        %366 = vmatprep.subr.mxu0 0.0
        %367 = vmatpush1.xpose.msra.mxu0 0.0
        %368 = vmatprep.subr.mxu0 0.0
        %369 = vmatpush1.xpose.msra.mxu0 0.0
        %370 = vmatprep.subr.mxu0 0.0
        %371 = vmatpush1.xpose.msra.mxu0 0.0
        %372 = vmatprep.subr.mxu0 0.0
        %373 = vmatpush1.xpose.msra.mxu0 0.0
        %374 = vmatprep.subr.mxu0 0.0
        %375 = vmatpush1.xpose.msra.mxu0 0.0
        %376 = vmatprep.subr.mxu0 0.0
        %377 = vmatpush1.xpose.msra.mxu0 0.0
        %378 = vmatprep.subr.mxu0 0.0
        %379 = vmatpush1.xpose.msra.mxu0 0.0
        %380 = vmatprep.subr.mxu0 0.0
        %381 = vmatpush1.xpose.msra.mxu0 0.0
        %382 = vmatprep.subr.mxu0 0.0
        %383 = vmatpush1.xpose.msra.mxu0 0.0
        %384 = vmatprep.subr.mxu0 0.0
        %385 = vmatpush1.xpose.msra.mxu0 0.0
        %386 = vmatprep.subr.mxu0 0.0
        %387 = vmatpush1.xpose.msra.mxu0 0.0
        %388 = vmatprep.mubr.f32.mxu0 %v314
        %389 = vmatmul.mubr.f32.gmra.mrb[0].mxu0 %v313
        %v390 = vpop.f32.mrb[0].mxu0
        %v391 = vadd.f32 0.0, %v390
        %v392 = vpop.f32.mrb[0].mxu0
        %393 = vdwg.mxu0
        %s394 = sld [smem:[#allocation2]]
        %v395 = vstv %s394
        %v396 = vmul.f32 %v391, %v395
        %vm397 = vcmask 64512
        %v398 = vsel %vm397, %v396, -inf
        %399 = vmax.xlane.f32.xlu0 %v398
        %v400 = vpop.xlane.xlu0 %399
        %v401 = vsub.f32 %v396, %v400
        %v402 = vmul.f32 %v401, 1.442695
        %v403 = vpow.pop %v402
        %v404 = vsel %vm397, %v403, 0.0
        %405 = vadd.xlane.f32.xlu0 %v404
        %v406 = vpop.xlane.xlu0 %405
        %v407 = vrcp.pop %v406
        %v408 = vmul.f32 %v403, %v407
        %v410 = vsel %vm397, %v408, 0
        %412 = vmatprep.subr.mxu0 %v305
        %413 = vmatpush1.msra.mxu0 %v304
        %414 = vmatprep.subr.mxu0 0.0
        %415 = vmatpush1.msra.mxu0 0.0
        %416 = vmatprep.subr.mxu0 0.0
        %417 = vmatpush1.msra.mxu0 0.0
        %418 = vmatprep.subr.mxu0 0.0
        %419 = vmatpush1.msra.mxu0 0.0
        %420 = vmatprep.subr.mxu0 0.0
        %421 = vmatpush1.msra.mxu0 0.0
        %422 = vmatprep.subr.mxu0 0.0
        %423 = vmatpush1.msra.mxu0 0.0
        %424 = vmatprep.subr.mxu0 0.0
        %425 = vmatpush1.msra.mxu0 0.0
        %426 = vmatprep.subr.mxu0 0.0
        %427 = vmatpush1.msra.mxu0 0.0
        %428 = vmatprep.subr.mxu0 0.0
        %429 = vmatpush1.msra.mxu0 0.0
        %430 = vmatprep.subr.mxu0 0.0
        %431 = vmatpush1.msra.mxu0 0.0
        %432 = vmatprep.subr.mxu0 0.0
        %433 = vmatpush1.msra.mxu0 0.0
        %434 = vmatprep.subr.mxu0 0.0
        %435 = vmatpush1.msra.mxu0 0.0
        %436 = vmatprep.subr.mxu0 0.0
        %437 = vmatpush1.msra.mxu0 0.0
        %438 = vmatprep.subr.mxu0 0.0
        %439 = vmatpush1.msra.mxu0 0.0
        %440 = vmatprep.subr.mxu0 0.0
        %441 = vmatpush1.msra.mxu0 0.0
        %442 = vmatprep.subr.mxu0 0.0
        %443 = vmatpush1.msra.mxu0 0.0
        %444 = vmatprep.subr.mxu0 0.0
        %445 = vmatpush1.msra.mxu0 0.0
        %446 = vmatprep.subr.mxu0 0.0
        %447 = vmatpush1.msra.mxu0 0.0
        %448 = vmatprep.subr.mxu0 0.0
        %449 = vmatpush1.msra.mxu0 0.0
        %450 = vmatprep.subr.mxu0 0.0
        %451 = vmatpush1.msra.mxu0 0.0
        %452 = vmatprep.subr.mxu0 0.0
        %453 = vmatpush1.msra.mxu0 0.0
        %454 = vmatprep.subr.mxu0 0.0
        %455 = vmatpush1.msra.mxu0 0.0
        %456 = vmatprep.subr.mxu0 0.0
        %457 = vmatpush1.msra.mxu0 0.0
        %458 = vmatprep.subr.mxu0 0.0
        %459 = vmatpush1.msra.mxu0 0.0
        %460 = vmatprep.subr.mxu0 0.0
        %461 = vmatpush1.msra.mxu0 0.0
        %462 = vmatprep.subr.mxu0 0.0
        %463 = vmatpush1.msra.mxu0 0.0
        %464 = vmatprep.subr.mxu0 0.0
        %465 = vmatpush1.msra.mxu0 0.0
        %466 = vmatprep.subr.mxu0 0.0
        %467 = vmatpush1.msra.mxu0 0.0
        %468 = vmatprep.subr.mxu0 0.0
        %469 = vmatpush1.msra.mxu0 0.0
        %470 = vmatprep.subr.mxu0 0.0
        %471 = vmatpush1.msra.mxu0 0.0
        %472 = vmatprep.subr.mxu0 0.0
        %473 = vmatpush1.msra.mxu0 0.0
        %474 = vmatprep.subr.mxu0 0.0
        %475 = vmatpush1.msra.mxu0 0.0
        %476 = vmatprep.mubr.f32.mxu0 0.0
        %477 = vmatmul.mubr.f32.gmra.mrb[0].mxu0 %v410
        %v478 = vpop.f32.mrb[0].mxu0
        %v479 = vadd.f32 0.0, %v478
        %v480 = vpop.f32.mrb[0].mxu0
        %v481 = vadd.f32 0.0, %v480
        %482 = vdwg.mxu0
        %v483 = vld [vmem:[%s4] sm:$0xff]
        %485 = vset.pattern.permute.xlu0 0
        %486 = vperm.xlu0 %485, %v483
        %v487 = vpop.permute.xlu0 %486
        %v489 = vmul.f32 %v479, %v487
        %v490 = vmul.f32 %v481, %v487
        %491 = vset.pattern.permute.xlu0 1
        %492 = vperm.xlu0 %491, %v266
        %v493 = vpop.permute.xlu0 %492
        %v495 = vmul.f32 %v264, %v493
        %v496 = vmul.f32 %v265, %v493
        %497 = vset.pattern.permute.xlu0 1
        %498 = vperm.xlu0 %497, %v267
        %v499 = vpop.permute.xlu0 %498
        %v501 = vadd.f32 %v495, %v499
        %v502 = vadd.f32 %v496, %v499
        %503 = vset.pattern.permute.xlu0 3
        %504 = vperm.xlu0 %503, %v266
        %v505 = vpop.permute.xlu0 %504
        %v507 = vmul.f32 %v264, %v505
        %v508 = vmul.f32 %v265, %v505
        %509 = vset.pattern.permute.xlu0 3
        %510 = vperm.xlu0 %509, %v267
        %v511 = vpop.permute.xlu0 %510
        %v513 = vadd.f32 %v507, %v511
        %v514 = vadd.f32 %v508, %v511
        %515 = vset.pattern.permute.xlu0 5
        %516 = vperm.xlu0 %515, %v266
        %v517 = vpop.permute.xlu0 %516
        %v519 = vmul.f32 %v264, %v517
        %v520 = vmul.f32 %v265, %v517
        %521 = vset.pattern.permute.xlu0 5
        %522 = vperm.xlu0 %521, %v267
        %v523 = vpop.permute.xlu0 %522
        %v525 = vadd.f32 %v519, %v523
        %v526 = vadd.f32 %v520, %v523
        %v527 = vmul.f32 %v501, %v501
        %v528 = vmul.f32 %v502, %v502
        %v529 = vadd.f32 %v527, %v528
        %530 = vadd.xlane.f32.xlu0 %v529
        %v531 = vpop.xlane.xlu0 %530
        %v532 = vmax.f32 %v531, 1e-24
        %v533 = vrsqrt.pop %v532
        %v534 = vmul.f32 %v501, %v533
        %v535 = vmul.f32 %v502, %v533
        %v536 = vmul.f32 %v513, %v513
        %v537 = vmul.f32 %v514, %v514
        %v538 = vadd.f32 %v536, %v537
        %539 = vadd.xlane.f32.xlu0 %v538
        %v540 = vpop.xlane.xlu0 %539
        %v541 = vmax.f32 %v540, 1e-24
        %v542 = vrsqrt.pop %v541
        %v543 = vmul.f32 %v513, %v542
        %v544 = vmul.f32 %v514, %v542
        %545 = vmatprep.subr.mxu0 %v544
        %546 = vmatpush1.xpose.msra.mxu0 %v543
        %547 = vmatprep.subr.mxu0 0.0
        %548 = vmatpush1.xpose.msra.mxu0 0.0
        %549 = vmatprep.subr.mxu0 0.0
        %550 = vmatpush1.xpose.msra.mxu0 0.0
        %551 = vmatprep.subr.mxu0 0.0
        %552 = vmatpush1.xpose.msra.mxu0 0.0
        %553 = vmatprep.subr.mxu0 0.0
        %554 = vmatpush1.xpose.msra.mxu0 0.0
        %555 = vmatprep.subr.mxu0 0.0
        %556 = vmatpush1.xpose.msra.mxu0 0.0
        %557 = vmatprep.subr.mxu0 0.0
        %558 = vmatpush1.xpose.msra.mxu0 0.0
        %559 = vmatprep.subr.mxu0 0.0
        %560 = vmatpush1.xpose.msra.mxu0 0.0
        %561 = vmatprep.subr.mxu0 0.0
        %562 = vmatpush1.xpose.msra.mxu0 0.0
        %563 = vmatprep.subr.mxu0 0.0
        %564 = vmatpush1.xpose.msra.mxu0 0.0
        %565 = vmatprep.subr.mxu0 0.0
        %566 = vmatpush1.xpose.msra.mxu0 0.0
        %567 = vmatprep.subr.mxu0 0.0
        %568 = vmatpush1.xpose.msra.mxu0 0.0
        %569 = vmatprep.subr.mxu0 0.0
        %570 = vmatpush1.xpose.msra.mxu0 0.0
        %571 = vmatprep.subr.mxu0 0.0
        %572 = vmatpush1.xpose.msra.mxu0 0.0
        %573 = vmatprep.subr.mxu0 0.0
        %574 = vmatpush1.xpose.msra.mxu0 0.0
        %575 = vmatprep.subr.mxu0 0.0
        %576 = vmatpush1.xpose.msra.mxu0 0.0
        %577 = vmatprep.subr.mxu0 0.0
        %578 = vmatpush1.xpose.msra.mxu0 0.0
        %579 = vmatprep.subr.mxu0 0.0
        %580 = vmatpush1.xpose.msra.mxu0 0.0
        %581 = vmatprep.subr.mxu0 0.0
        %582 = vmatpush1.xpose.msra.mxu0 0.0
        %583 = vmatprep.subr.mxu0 0.0
        %584 = vmatpush1.xpose.msra.mxu0 0.0
        %585 = vmatprep.subr.mxu0 0.0
        %586 = vmatpush1.xpose.msra.mxu0 0.0
        %587 = vmatprep.subr.mxu0 0.0
        %588 = vmatpush1.xpose.msra.mxu0 0.0
        %589 = vmatprep.subr.mxu0 0.0
        %590 = vmatpush1.xpose.msra.mxu0 0.0
        %591 = vmatprep.subr.mxu0 0.0
        %592 = vmatpush1.xpose.msra.mxu0 0.0
        %593 = vmatprep.subr.mxu0 0.0
        %594 = vmatpush1.xpose.msra.mxu0 0.0
        %595 = vmatprep.subr.mxu0 0.0
        %596 = vmatpush1.xpose.msra.mxu0 0.0
        %597 = vmatprep.subr.mxu0 0.0
        %598 = vmatpush1.xpose.msra.mxu0 0.0
        %599 = vmatprep.subr.mxu0 0.0
        %600 = vmatpush1.xpose.msra.mxu0 0.0
        %601 = vmatprep.subr.mxu0 0.0
        %602 = vmatpush1.xpose.msra.mxu0 0.0
        %603 = vmatprep.subr.mxu0 0.0
        %604 = vmatpush1.xpose.msra.mxu0 0.0
        %605 = vmatprep.subr.mxu0 0.0
        %606 = vmatpush1.xpose.msra.mxu0 0.0
        %607 = vmatprep.subr.mxu0 0.0
        %608 = vmatpush1.xpose.msra.mxu0 0.0
        %609 = vmatprep.mubr.f32.mxu0 %v535
        %610 = vmatmul.mubr.f32.gmra.mrb[0].mxu0 %v534
        %v611 = vpop.f32.mrb[0].mxu0
        %v612 = vadd.f32 0.0, %v611
        %v613 = vpop.f32.mrb[0].mxu0
        %614 = vdwg.mxu0
        %s615 = sld [smem:[#allocation2 + $0x2]]
        %v616 = vstv %s615
        %v617 = vmul.f32 %v612, %v616
        %v618 = vsel %vm397, %v617, -inf
        %619 = vmax.xlane.f32.xlu0 %v618
        %v620 = vpop.xlane.xlu0 %619
        %v621 = vsub.f32 %v617, %v620
        %v622 = vmul.f32 %v621, 1.442695
        %v623 = vpow.pop %v622
        %v624 = vsel %vm397, %v623, 0.0
        %625 = vadd.xlane.f32.xlu0 %v624
        %v626 = vpop.xlane.xlu0 %625
        %v627 = vrcp.pop %v626
        %v628 = vmul.f32 %v623, %v627
        %v630 = vsel %vm397, %v628, 0
        %632 = vmatprep.subr.mxu0 %v526
        %633 = vmatpush1.msra.mxu0 %v525
        %634 = vmatprep.subr.mxu0 0.0
        %635 = vmatpush1.msra.mxu0 0.0
        %636 = vmatprep.subr.mxu0 0.0
        %637 = vmatpush1.msra.mxu0 0.0
        %638 = vmatprep.subr.mxu0 0.0
        %639 = vmatpush1.msra.mxu0 0.0
        %640 = vmatprep.subr.mxu0 0.0
        %641 = vmatpush1.msra.mxu0 0.0
        %642 = vmatprep.subr.mxu0 0.0
        %643 = vmatpush1.msra.mxu0 0.0
        %644 = vmatprep.subr.mxu0 0.0
        %645 = vmatpush1.msra.mxu0 0.0
        %646 = vmatprep.subr.mxu0 0.0
        %647 = vmatpush1.msra.mxu0 0.0
        %648 = vmatprep.subr.mxu0 0.0
        %649 = vmatpush1.msra.mxu0 0.0
        %650 = vmatprep.subr.mxu0 0.0
        %651 = vmatpush1.msra.mxu0 0.0
        %652 = vmatprep.subr.mxu0 0.0
        %653 = vmatpush1.msra.mxu0 0.0
        %654 = vmatprep.subr.mxu0 0.0
        %655 = vmatpush1.msra.mxu0 0.0
        %656 = vmatprep.subr.mxu0 0.0
        %657 = vmatpush1.msra.mxu0 0.0
        %658 = vmatprep.subr.mxu0 0.0
        %659 = vmatpush1.msra.mxu0 0.0
        %660 = vmatprep.subr.mxu0 0.0
        %661 = vmatpush1.msra.mxu0 0.0
        %662 = vmatprep.subr.mxu0 0.0
        %663 = vmatpush1.msra.mxu0 0.0
        %664 = vmatprep.subr.mxu0 0.0
        %665 = vmatpush1.msra.mxu0 0.0
        %666 = vmatprep.subr.mxu0 0.0
        %667 = vmatpush1.msra.mxu0 0.0
        %668 = vmatprep.subr.mxu0 0.0
        %669 = vmatpush1.msra.mxu0 0.0
        %670 = vmatprep.subr.mxu0 0.0
        %671 = vmatpush1.msra.mxu0 0.0
        %672 = vmatprep.subr.mxu0 0.0
        %673 = vmatpush1.msra.mxu0 0.0
        %674 = vmatprep.subr.mxu0 0.0
        %675 = vmatpush1.msra.mxu0 0.0
        %676 = vmatprep.subr.mxu0 0.0
        %677 = vmatpush1.msra.mxu0 0.0
        %678 = vmatprep.subr.mxu0 0.0
        %679 = vmatpush1.msra.mxu0 0.0
        %680 = vmatprep.subr.mxu0 0.0
        %681 = vmatpush1.msra.mxu0 0.0
        %682 = vmatprep.subr.mxu0 0.0
        %683 = vmatpush1.msra.mxu0 0.0
        %684 = vmatprep.subr.mxu0 0.0
        %685 = vmatpush1.msra.mxu0 0.0
        %686 = vmatprep.subr.mxu0 0.0
        %687 = vmatpush1.msra.mxu0 0.0
        %688 = vmatprep.subr.mxu0 0.0
        %689 = vmatpush1.msra.mxu0 0.0
        %690 = vmatprep.subr.mxu0 0.0
        %691 = vmatpush1.msra.mxu0 0.0
        %692 = vmatprep.subr.mxu0 0.0
        %693 = vmatpush1.msra.mxu0 0.0
        %694 = vmatprep.subr.mxu0 0.0
        %695 = vmatpush1.msra.mxu0 0.0
        %696 = vmatprep.mubr.f32.mxu0 0.0
        %697 = vmatmul.mubr.f32.gmra.mrb[0].mxu0 %v630
        %v698 = vpop.f32.mrb[0].mxu0
        %v699 = vadd.f32 0.0, %v698
        %v700 = vpop.f32.mrb[0].mxu0
        %v701 = vadd.f32 0.0, %v700
        %702 = vdwg.mxu0
        %703 = vset.pattern.permute.xlu0 1
        %704 = vperm.xlu0 %703, %v483
        %v705 = vpop.permute.xlu0 %704
        %v707 = vmul.f32 %v699, %v705
        %v708 = vmul.f32 %v701, %v705
        %v709 = vadd.f32 %v489, %v707
        %v710 = vadd.f32 %v490, %v708
        %v711 = vld [vmem:[%s5] sm:$0xff]
        %713 = vset.pattern.permute.xlu0 0
        %714 = vperm.xlu0 %713, %v711
        %v715 = vpop.permute.xlu0 %714
        %v717 = vadd.f32 %v709, %v715
        %v718 = vadd.f32 %v710, %v715
        %719 = vst [vmem:[%s258] sm:$0xff] %v717
        %720 = vst [vmem:[%s258 + $0x8] sm:$0xff] %v718
        %v721 = vld [vmem:[%s263 + $0x10] sm:$0xff]
        %v722 = vld [vmem:[%s263 + $0x18] sm:$0xff]
        %v723 = vld [vmem:[%s2 + $0x8] sm:$0xff]
        %v724 = vld [vmem:[%s3 + $0x8] sm:$0xff]
        %726 = vset.pattern.permute.xlu0 0
        %727 = vperm.xlu0 %726, %v723
        %v728 = vpop.permute.xlu0 %727
        %v730 = vmul.f32 %v721, %v728
        %v731 = vmul.f32 %v722, %v728
        %733 = vset.pattern.permute.xlu0 0
        %734 = vperm.xlu0 %733, %v724
        %v735 = vpop.permute.xlu0 %734
        %v737 = vadd.f32 %v730, %v735
        %v738 = vadd.f32 %v731, %v735
        %739 = vset.pattern.permute.xlu0 2
        %740 = vperm.xlu0 %739, %v723
        %v741 = vpop.permute.xlu0 %740
        %v743 = vmul.f32 %v721, %v741
        %v744 = vmul.f32 %v722, %v741
        %745 = vset.pattern.permute.xlu0 2
        %746 = vperm.xlu0 %745, %v724
        %v747 = vpop.permute.xlu0 %746
        %v749 = vadd.f32 %v743, %v747
        %v750 = vadd.f32 %v744, %v747
        %751 = vset.pattern.permute.xlu0 4
        %752 = vperm.xlu0 %751, %v723
        %v753 = vpop.permute.xlu0 %752
        %v755 = vmul.f32 %v721, %v753
        %v756 = vmul.f32 %v722, %v753
        %757 = vset.pattern.permute.xlu0 4
        %758 = vperm.xlu0 %757, %v724
        %v759 = vpop.permute.xlu0 %758
        %v761 = vadd.f32 %v755, %v759
        %v762 = vadd.f32 %v756, %v759
        %v763 = vmul.f32 %v737, %v737
        %v764 = vmul.f32 %v738, %v738
        %v765 = vadd.f32 %v763, %v764
        %766 = vadd.xlane.f32.xlu0 %v765
        %v767 = vpop.xlane.xlu0 %766
        %v768 = vmax.f32 %v767, 1e-24
        %v769 = vrsqrt.pop %v768
        %v770 = vmul.f32 %v737, %v769
        %v771 = vmul.f32 %v738, %v769
        %v772 = vmul.f32 %v749, %v749
        %v773 = vmul.f32 %v750, %v750
        %v774 = vadd.f32 %v772, %v773
        %775 = vadd.xlane.f32.xlu0 %v774
        %v776 = vpop.xlane.xlu0 %775
        %v777 = vmax.f32 %v776, 1e-24
        %v778 = vrsqrt.pop %v777
        %v779 = vmul.f32 %v749, %v778
        %v780 = vmul.f32 %v750, %v778
        %781 = vmatprep.subr.mxu0 %v780
        %782 = vmatpush1.xpose.msra.mxu0 %v779
        %783 = vmatprep.subr.mxu0 0.0
        %784 = vmatpush1.xpose.msra.mxu0 0.0
        %785 = vmatprep.subr.mxu0 0.0
        %786 = vmatpush1.xpose.msra.mxu0 0.0
        %787 = vmatprep.subr.mxu0 0.0
        %788 = vmatpush1.xpose.msra.mxu0 0.0
        %789 = vmatprep.subr.mxu0 0.0
        %790 = vmatpush1.xpose.msra.mxu0 0.0
        %791 = vmatprep.subr.mxu0 0.0
        %792 = vmatpush1.xpose.msra.mxu0 0.0
        %793 = vmatprep.subr.mxu0 0.0
        %794 = vmatpush1.xpose.msra.mxu0 0.0
        %795 = vmatprep.subr.mxu0 0.0
        %796 = vmatpush1.xpose.msra.mxu0 0.0
        %797 = vmatprep.subr.mxu0 0.0
        %798 = vmatpush1.xpose.msra.mxu0 0.0
        %799 = vmatprep.subr.mxu0 0.0
        %800 = vmatpush1.xpose.msra.mxu0 0.0
        %801 = vmatprep.subr.mxu0 0.0
        %802 = vmatpush1.xpose.msra.mxu0 0.0
        %803 = vmatprep.subr.mxu0 0.0
        %804 = vmatpush1.xpose.msra.mxu0 0.0
        %805 = vmatprep.subr.mxu0 0.0
        %806 = vmatpush1.xpose.msra.mxu0 0.0
        %807 = vmatprep.subr.mxu0 0.0
        %808 = vmatpush1.xpose.msra.mxu0 0.0
        %809 = vmatprep.subr.mxu0 0.0
        %810 = vmatpush1.xpose.msra.mxu0 0.0
        %811 = vmatprep.subr.mxu0 0.0
        %812 = vmatpush1.xpose.msra.mxu0 0.0
        %813 = vmatprep.subr.mxu0 0.0
        %814 = vmatpush1.xpose.msra.mxu0 0.0
        %815 = vmatprep.subr.mxu0 0.0
        %816 = vmatpush1.xpose.msra.mxu0 0.0
        %817 = vmatprep.subr.mxu0 0.0
        %818 = vmatpush1.xpose.msra.mxu0 0.0
        %819 = vmatprep.subr.mxu0 0.0
        %820 = vmatpush1.xpose.msra.mxu0 0.0
        %821 = vmatprep.subr.mxu0 0.0
        %822 = vmatpush1.xpose.msra.mxu0 0.0
        %823 = vmatprep.subr.mxu0 0.0
        %824 = vmatpush1.xpose.msra.mxu0 0.0
        %825 = vmatprep.subr.mxu0 0.0
        %826 = vmatpush1.xpose.msra.mxu0 0.0
        %827 = vmatprep.subr.mxu0 0.0
        %828 = vmatpush1.xpose.msra.mxu0 0.0
        %829 = vmatprep.subr.mxu0 0.0
        %830 = vmatpush1.xpose.msra.mxu0 0.0
        %831 = vmatprep.subr.mxu0 0.0
        %832 = vmatpush1.xpose.msra.mxu0 0.0
        %833 = vmatprep.subr.mxu0 0.0
        %834 = vmatpush1.xpose.msra.mxu0 0.0
        %835 = vmatprep.subr.mxu0 0.0
        %836 = vmatpush1.xpose.msra.mxu0 0.0
        %837 = vmatprep.subr.mxu0 0.0
        %838 = vmatpush1.xpose.msra.mxu0 0.0
        %839 = vmatprep.subr.mxu0 0.0
        %840 = vmatpush1.xpose.msra.mxu0 0.0
        %841 = vmatprep.subr.mxu0 0.0
        %842 = vmatpush1.xpose.msra.mxu0 0.0
        %843 = vmatprep.subr.mxu0 0.0
        %844 = vmatpush1.xpose.msra.mxu0 0.0
        %845 = vmatprep.mubr.f32.mxu0 %v771
        %846 = vmatmul.mubr.f32.gmra.mrb[0].mxu0 %v770
        %v847 = vpop.f32.mrb[0].mxu0
        %v848 = vadd.f32 0.0, %v847
        %v849 = vpop.f32.mrb[0].mxu0
        %850 = vdwg.mxu0
        %s851 = sld [smem:[#allocation2 + $0x1]]
        %v852 = vstv %s851
        %v853 = vmul.f32 %v848, %v852
        %v854 = vsel %vm397, %v853, -inf
        %855 = vmax.xlane.f32.xlu0 %v854
        %v856 = vpop.xlane.xlu0 %855
        %v857 = vsub.f32 %v853, %v856
        %v858 = vmul.f32 %v857, 1.442695
        %v859 = vpow.pop %v858
        %v860 = vsel %vm397, %v859, 0.0
        %861 = vadd.xlane.f32.xlu0 %v860
        %v862 = vpop.xlane.xlu0 %861
        %v863 = vrcp.pop %v862
        %v864 = vmul.f32 %v859, %v863
        %v866 = vsel %vm397, %v864, 0
        %868 = vmatprep.subr.mxu0 %v762
        %869 = vmatpush1.msra.mxu0 %v761
        %870 = vmatprep.subr.mxu0 0.0
        %871 = vmatpush1.msra.mxu0 0.0
        %872 = vmatprep.subr.mxu0 0.0
        %873 = vmatpush1.msra.mxu0 0.0
        %874 = vmatprep.subr.mxu0 0.0
        %875 = vmatpush1.msra.mxu0 0.0
        %876 = vmatprep.subr.mxu0 0.0
        %877 = vmatpush1.msra.mxu0 0.0
        %878 = vmatprep.subr.mxu0 0.0
        %879 = vmatpush1.msra.mxu0 0.0
        %880 = vmatprep.subr.mxu0 0.0
        %881 = vmatpush1.msra.mxu0 0.0
        %882 = vmatprep.subr.mxu0 0.0
        %883 = vmatpush1.msra.mxu0 0.0
        %884 = vmatprep.subr.mxu0 0.0
        %885 = vmatpush1.msra.mxu0 0.0
        %886 = vmatprep.subr.mxu0 0.0
        %887 = vmatpush1.msra.mxu0 0.0
        %888 = vmatprep.subr.mxu0 0.0
        %889 = vmatpush1.msra.mxu0 0.0
        %890 = vmatprep.subr.mxu0 0.0
        %891 = vmatpush1.msra.mxu0 0.0
        %892 = vmatprep.subr.mxu0 0.0
        %893 = vmatpush1.msra.mxu0 0.0
        %894 = vmatprep.subr.mxu0 0.0
        %895 = vmatpush1.msra.mxu0 0.0
        %896 = vmatprep.subr.mxu0 0.0
        %897 = vmatpush1.msra.mxu0 0.0
        %898 = vmatprep.subr.mxu0 0.0
        %899 = vmatpush1.msra.mxu0 0.0
        %900 = vmatprep.subr.mxu0 0.0
        %901 = vmatpush1.msra.mxu0 0.0
        %902 = vmatprep.subr.mxu0 0.0
        %903 = vmatpush1.msra.mxu0 0.0
        %904 = vmatprep.subr.mxu0 0.0
        %905 = vmatpush1.msra.mxu0 0.0
        %906 = vmatprep.subr.mxu0 0.0
        %907 = vmatpush1.msra.mxu0 0.0
        %908 = vmatprep.subr.mxu0 0.0
        %909 = vmatpush1.msra.mxu0 0.0
        %910 = vmatprep.subr.mxu0 0.0
        %911 = vmatpush1.msra.mxu0 0.0
        %912 = vmatprep.subr.mxu0 0.0
        %913 = vmatpush1.msra.mxu0 0.0
        %914 = vmatprep.subr.mxu0 0.0
        %915 = vmatpush1.msra.mxu0 0.0
        %916 = vmatprep.subr.mxu0 0.0
        %917 = vmatpush1.msra.mxu0 0.0
        %918 = vmatprep.subr.mxu0 0.0
        %919 = vmatpush1.msra.mxu0 0.0
        %920 = vmatprep.subr.mxu0 0.0
        %921 = vmatpush1.msra.mxu0 0.0
        %922 = vmatprep.subr.mxu0 0.0
        %923 = vmatpush1.msra.mxu0 0.0
        %924 = vmatprep.subr.mxu0 0.0
        %925 = vmatpush1.msra.mxu0 0.0
        %926 = vmatprep.subr.mxu0 0.0
        %927 = vmatpush1.msra.mxu0 0.0
        %928 = vmatprep.subr.mxu0 0.0
        %929 = vmatpush1.msra.mxu0 0.0
        %930 = vmatprep.subr.mxu0 0.0
        %931 = vmatpush1.msra.mxu0 0.0
        %932 = vmatprep.mubr.f32.mxu0 0.0
        %933 = vmatmul.mubr.f32.gmra.mrb[0].mxu0 %v866
        %v934 = vpop.f32.mrb[0].mxu0
        %v935 = vadd.f32 0.0, %v934
        %v936 = vpop.f32.mrb[0].mxu0
        %v937 = vadd.f32 0.0, %v936
        %938 = vdwg.mxu0
        %v939 = vld [vmem:[%s4 + $0x8] sm:$0xff]
        %941 = vset.pattern.permute.xlu0 0
        %942 = vperm.xlu0 %941, %v939
        %v943 = vpop.permute.xlu0 %942
        %v945 = vmul.f32 %v935, %v943
        %v946 = vmul.f32 %v937, %v943
        %947 = vset.pattern.permute.xlu0 1
        %948 = vperm.xlu0 %947, %v723
        %v949 = vpop.permute.xlu0 %948
        %v951 = vmul.f32 %v721, %v949
        %v952 = vmul.f32 %v722, %v949
        %953 = vset.pattern.permute.xlu0 1
        %954 = vperm.xlu0 %953, %v724
        %v955 = vpop.permute.xlu0 %954
        %v957 = vadd.f32 %v951, %v955
        %v958 = vadd.f32 %v952, %v955
        %959 = vset.pattern.permute.xlu0 3
        %960 = vperm.xlu0 %959, %v723
        %v961 = vpop.permute.xlu0 %960
        %v963 = vmul.f32 %v721, %v961
        %v964 = vmul.f32 %v722, %v961
        %965 = vset.pattern.permute.xlu0 3
        %966 = vperm.xlu0 %965, %v724
        %v967 = vpop.permute.xlu0 %966
        %v969 = vadd.f32 %v963, %v967
        %v970 = vadd.f32 %v964, %v967
        %971 = vset.pattern.permute.xlu0 5
        %972 = vperm.xlu0 %971, %v723
        %v973 = vpop.permute.xlu0 %972
        %v975 = vmul.f32 %v721, %v973
        %v976 = vmul.f32 %v722, %v973
        %977 = vset.pattern.permute.xlu0 5
        %978 = vperm.xlu0 %977, %v724
        %v979 = vpop.permute.xlu0 %978
        %v981 = vadd.f32 %v975, %v979
        %v982 = vadd.f32 %v976, %v979
        %v983 = vmul.f32 %v957, %v957
        %v984 = vmul.f32 %v958, %v958
        %v985 = vadd.f32 %v983, %v984
        %986 = vadd.xlane.f32.xlu0 %v985
        %v987 = vpop.xlane.xlu0 %986
        %v988 = vmax.f32 %v987, 1e-24
        %v989 = vrsqrt.pop %v988
        %v990 = vmul.f32 %v957, %v989
        %v991 = vmul.f32 %v958, %v989
        %v992 = vmul.f32 %v969, %v969
        %v993 = vmul.f32 %v970, %v970
        %v994 = vadd.f32 %v992, %v993
        %995 = vadd.xlane.f32.xlu0 %v994
        %v996 = vpop.xlane.xlu0 %995
        %v997 = vmax.f32 %v996, 1e-24
        %v998 = vrsqrt.pop %v997
        %v999 = vmul.f32 %v969, %v998
        %v1000 = vmul.f32 %v970, %v998
        %1001 = vmatprep.subr.mxu0 %v1000
        %1002 = vmatpush1.xpose.msra.mxu0 %v999
        %1003 = vmatprep.subr.mxu0 0.0
        %1004 = vmatpush1.xpose.msra.mxu0 0.0
        %1005 = vmatprep.subr.mxu0 0.0
        %1006 = vmatpush1.xpose.msra.mxu0 0.0
        %1007 = vmatprep.subr.mxu0 0.0
        %1008 = vmatpush1.xpose.msra.mxu0 0.0
        %1009 = vmatprep.subr.mxu0 0.0
        %1010 = vmatpush1.xpose.msra.mxu0 0.0
        %1011 = vmatprep.subr.mxu0 0.0
        %1012 = vmatpush1.xpose.msra.mxu0 0.0
        %1013 = vmatprep.subr.mxu0 0.0
        %1014 = vmatpush1.xpose.msra.mxu0 0.0
        %1015 = vmatprep.subr.mxu0 0.0
        %1016 = vmatpush1.xpose.msra.mxu0 0.0
        %1017 = vmatprep.subr.mxu0 0.0
        %1018 = vmatpush1.xpose.msra.mxu0 0.0
        %1019 = vmatprep.subr.mxu0 0.0
        %1020 = vmatpush1.xpose.msra.mxu0 0.0
        %1021 = vmatprep.subr.mxu0 0.0
        %1022 = vmatpush1.xpose.msra.mxu0 0.0
        %1023 = vmatprep.subr.mxu0 0.0
        %1024 = vmatpush1.xpose.msra.mxu0 0.0
        %1025 = vmatprep.subr.mxu0 0.0
        %1026 = vmatpush1.xpose.msra.mxu0 0.0
        %1027 = vmatprep.subr.mxu0 0.0
        %1028 = vmatpush1.xpose.msra.mxu0 0.0
        %1029 = vmatprep.subr.mxu0 0.0
        %1030 = vmatpush1.xpose.msra.mxu0 0.0
        %1031 = vmatprep.subr.mxu0 0.0
        %1032 = vmatpush1.xpose.msra.mxu0 0.0
        %1033 = vmatprep.subr.mxu0 0.0
        %1034 = vmatpush1.xpose.msra.mxu0 0.0
        %1035 = vmatprep.subr.mxu0 0.0
        %1036 = vmatpush1.xpose.msra.mxu0 0.0
        %1037 = vmatprep.subr.mxu0 0.0
        %1038 = vmatpush1.xpose.msra.mxu0 0.0
        %1039 = vmatprep.subr.mxu0 0.0
        %1040 = vmatpush1.xpose.msra.mxu0 0.0
        %1041 = vmatprep.subr.mxu0 0.0
        %1042 = vmatpush1.xpose.msra.mxu0 0.0
        %1043 = vmatprep.subr.mxu0 0.0
        %1044 = vmatpush1.xpose.msra.mxu0 0.0
        %1045 = vmatprep.subr.mxu0 0.0
        %1046 = vmatpush1.xpose.msra.mxu0 0.0
        %1047 = vmatprep.subr.mxu0 0.0
        %1048 = vmatpush1.xpose.msra.mxu0 0.0
        %1049 = vmatprep.subr.mxu0 0.0
        %1050 = vmatpush1.xpose.msra.mxu0 0.0
        %1051 = vmatprep.subr.mxu0 0.0
        %1052 = vmatpush1.xpose.msra.mxu0 0.0
        %1053 = vmatprep.subr.mxu0 0.0
        %1054 = vmatpush1.xpose.msra.mxu0 0.0
        %1055 = vmatprep.subr.mxu0 0.0
        %1056 = vmatpush1.xpose.msra.mxu0 0.0
        %1057 = vmatprep.subr.mxu0 0.0
        %1058 = vmatpush1.xpose.msra.mxu0 0.0
        %1059 = vmatprep.subr.mxu0 0.0
        %1060 = vmatpush1.xpose.msra.mxu0 0.0
        %1061 = vmatprep.subr.mxu0 0.0
        %1062 = vmatpush1.xpose.msra.mxu0 0.0
        %1063 = vmatprep.subr.mxu0 0.0
        %1064 = vmatpush1.xpose.msra.mxu0 0.0
        %1065 = vmatprep.mubr.f32.mxu0 %v991
        %1066 = vmatmul.mubr.f32.gmra.mrb[0].mxu0 %v990
        %v1067 = vpop.f32.mrb[0].mxu0
        %v1068 = vadd.f32 0.0, %v1067
        %v1069 = vpop.f32.mrb[0].mxu0
        %1070 = vdwg.mxu0
        %s1071 = sld [smem:[#allocation2 + $0x3]]
        %v1072 = vstv %s1071
        %v1073 = vmul.f32 %v1068, %v1072
        %v1074 = vsel %vm397, %v1073, -inf
        %1075 = vmax.xlane.f32.xlu0 %v1074
        %v1076 = vpop.xlane.xlu0 %1075
        %v1077 = vsub.f32 %v1073, %v1076
        %v1078 = vmul.f32 %v1077, 1.442695
        %v1079 = vpow.pop %v1078
        %v1080 = vsel %vm397, %v1079, 0.0
        %1081 = vadd.xlane.f32.xlu0 %v1080
        %v1082 = vpop.xlane.xlu0 %1081
        %v1083 = vrcp.pop %v1082
        %v1084 = vmul.f32 %v1079, %v1083
        %v1086 = vsel %vm397, %v1084, 0
        %1088 = vmatprep.subr.mxu0 %v982
        %1089 = vmatpush1.msra.mxu0 %v981
        %1090 = vmatprep.subr.mxu0 0.0
        %1091 = vmatpush1.msra.mxu0 0.0
        %1092 = vmatprep.subr.mxu0 0.0
        %1093 = vmatpush1.msra.mxu0 0.0
        %1094 = vmatprep.subr.mxu0 0.0
        %1095 = vmatpush1.msra.mxu0 0.0
        %1096 = vmatprep.subr.mxu0 0.0
        %1097 = vmatpush1.msra.mxu0 0.0
        %1098 = vmatprep.subr.mxu0 0.0
        %1099 = vmatpush1.msra.mxu0 0.0
        %1100 = vmatprep.subr.mxu0 0.0
        %1101 = vmatpush1.msra.mxu0 0.0
        %1102 = vmatprep.subr.mxu0 0.0
        %1103 = vmatpush1.msra.mxu0 0.0
        %1104 = vmatprep.subr.mxu0 0.0
        %1105 = vmatpush1.msra.mxu0 0.0
        %1106 = vmatprep.subr.mxu0 0.0
        %1107 = vmatpush1.msra.mxu0 0.0
        %1108 = vmatprep.subr.mxu0 0.0
        %1109 = vmatpush1.msra.mxu0 0.0
        %1110 = vmatprep.subr.mxu0 0.0
        %1111 = vmatpush1.msra.mxu0 0.0
        %1112 = vmatprep.subr.mxu0 0.0
        %1113 = vmatpush1.msra.mxu0 0.0
        %1114 = vmatprep.subr.mxu0 0.0
        %1115 = vmatpush1.msra.mxu0 0.0
        %1116 = vmatprep.subr.mxu0 0.0
        %1117 = vmatpush1.msra.mxu0 0.0
        %1118 = vmatprep.subr.mxu0 0.0
        %1119 = vmatpush1.msra.mxu0 0.0
        %1120 = vmatprep.subr.mxu0 0.0
        %1121 = vmatpush1.msra.mxu0 0.0
        %1122 = vmatprep.subr.mxu0 0.0
        %1123 = vmatpush1.msra.mxu0 0.0
        %1124 = vmatprep.subr.mxu0 0.0
        %1125 = vmatpush1.msra.mxu0 0.0
        %1126 = vmatprep.subr.mxu0 0.0
        %1127 = vmatpush1.msra.mxu0 0.0
        %1128 = vmatprep.subr.mxu0 0.0
        %1129 = vmatpush1.msra.mxu0 0.0
        %1130 = vmatprep.subr.mxu0 0.0
        %1131 = vmatpush1.msra.mxu0 0.0
        %1132 = vmatprep.subr.mxu0 0.0
        %1133 = vmatpush1.msra.mxu0 0.0
        %1134 = vmatprep.subr.mxu0 0.0
        %1135 = vmatpush1.msra.mxu0 0.0
        %1136 = vmatprep.subr.mxu0 0.0
        %1137 = vmatpush1.msra.mxu0 0.0
        %1138 = vmatprep.subr.mxu0 0.0
        %1139 = vmatpush1.msra.mxu0 0.0
        %1140 = vmatprep.subr.mxu0 0.0
        %1141 = vmatpush1.msra.mxu0 0.0
        %1142 = vmatprep.subr.mxu0 0.0
        %1143 = vmatpush1.msra.mxu0 0.0
        %1144 = vmatprep.subr.mxu0 0.0
        %1145 = vmatpush1.msra.mxu0 0.0
        %1146 = vmatprep.subr.mxu0 0.0
        %1147 = vmatpush1.msra.mxu0 0.0
        %1148 = vmatprep.subr.mxu0 0.0
        %1149 = vmatpush1.msra.mxu0 0.0
        %1150 = vmatprep.subr.mxu0 0.0
        %1151 = vmatpush1.msra.mxu0 0.0
        %1152 = vmatprep.mubr.f32.mxu0 0.0
        %1153 = vmatmul.mubr.f32.gmra.mrb[0].mxu0 %v1086
        %v1154 = vpop.f32.mrb[0].mxu0
        %v1155 = vadd.f32 0.0, %v1154
        %v1156 = vpop.f32.mrb[0].mxu0
        %v1157 = vadd.f32 0.0, %v1156
        %1158 = vdwg.mxu0
        %1159 = vset.pattern.permute.xlu0 1
        %1160 = vperm.xlu0 %1159, %v939
        %v1161 = vpop.permute.xlu0 %1160
        %v1163 = vmul.f32 %v1155, %v1161
        %v1164 = vmul.f32 %v1157, %v1161
        %v1165 = vadd.f32 %v945, %v1163
        %v1166 = vadd.f32 %v946, %v1164
        %v1167 = vld [vmem:[%s5 + $0x8] sm:$0xff]
        %1169 = vset.pattern.permute.xlu0 0
        %1170 = vperm.xlu0 %1169, %v1167
        %v1171 = vpop.permute.xlu0 %1170
        %v1173 = vadd.f32 %v1165, %v1171
        %v1174 = vadd.f32 %v1166, %v1171
        %1175 = vst [vmem:[%s258 + $0x10] sm:$0xff] %v1173
        %1176 = vst [vmem:[%s258 + $0x18] sm:$0xff] %v1174
        %s1177 = sand.u32 %s160, 1
        %s1178 = scalar_lea.sflag [#allocation3], %s1177
        %s1179 = sand.u32 %s160, 1
        %s1180 = smul.addr %s1179, 32
        %s1181 = scalar_lea.vmem [#allocation5], %s1180
        // Predicated region
        $region49: #{tpu_custom_call.1} parent=43 // pred_check
          %p1182 = pneg %p170
        $region50: #{tpu_custom_call.1} parent=43 // pred_check_branch
          %1184 = sbr.rel (%p1182) target = $region52
        $region51: #{tpu_custom_call.1} parent=43 // pred_region
          %s1186 = ssub.s32 512, 512
          %1187 = vsyncadd %s1178, %s1186
          %s1188 = smul.addr %s21, 4
          %s1189 = smul.addr %s1188, 128
          %s1190 = scalar_lea.hbm %s6, %s1189
          %s1191 = sshll.u32 %s1181, 4
          %s1192 = int_to_ptr.vmem [resolvable:$true] %s1191
          %1197 = dma.vmem_to_hbm [thread:$0]  %s1192, 512, %s1190, %s1178, 256, 256, 16
        $region52: #{tpu_custom_call.1} parent=43 // pred_fallthru
          _
      $region44: #{tpu_custom_call.1} parent=5 // pred_fallthru
        _
      %p1198 = scmp.le.s32.totalorder 2, %s16
      // Predicated region
      $region53: #{tpu_custom_call.1} parent=5 // pred_check
        %p1199 = pneg %p1198
      $region54: #{tpu_custom_call.1} parent=5 // pred_check_branch
        %1201 = sbr.rel (%p1199) target = $region56
      $region55: #{tpu_custom_call.1} parent=5 // pred_region
        %s1202 = ssub.s32 %s16, 2
        // Predicated region
        $region57: #{tpu_custom_call.1} parent=55 // pred_check
          %p1203 = pneg %p176
        $region58: #{tpu_custom_call.1} parent=55 // pred_check_branch
          %1205 = sbr.rel (%p1203) target = $region60
        $region59: #{tpu_custom_call.1} parent=55 // pred_region
          %s1206 = sand.u32 %s161, 1
          %s1207 = scalar_lea.sflag [#allocation3], %s1206
          %s1208 = sand.u32 %s161, 1
          %s1209 = smul.addr %s1208, 32
          %s1210 = scalar_lea.vmem [#allocation5], %s1209
          %1211 = dma.done %s1207, 512
        $region60: #{tpu_custom_call.1} parent=55 // pred_fallthru
          _
      $region56: #{tpu_custom_call.1} parent=5 // pred_fallthru
        _
    $region6: #{tpu_custom_call.1} parent=1 // loop_footer
      %s20 = sadd.s32 1, %s16
    $region7: #{tpu_custom_call.1} parent=1 // loop_footer_branch
      %15 = sbr.rel target = $region3
    $region8: #{tpu_custom_call.1} parent=1 // loop_exit
      _
    %1212 = vsyncpa [#allocation3], 1
    %s1213 = scalar_lea.sflag [#allocation3], 1
    %1214 = vsyncpa %s1213, 1
    %1215 = vsyncpa [#allocation4], 1
    %s1216 = scalar_lea.sflag [#allocation4], 1
    %1217 = vsyncpa %s1216, 1

</llo_original>
